<compile_context>
chip_gen: v7x
topology: tpu7x:2x2x1
jax: 0.10.0
libtpu: 0.0.40
codegen_flags: <defaults>
</compile_context>

<pallas_src>
import functools

import jax
import jax.numpy as jnp
from jax import lax
from jax.experimental import pallas as pl
from jax.experimental.pallas import tpu as pltpu


# ----------------------------- Pallas kernel --------------------------------


def bilstm_head_kernel(x_ref, wih_ref, whh_ref, b_ref,
                       whid_ref, bhid_ref, wout_ref, bout_ref,
                       out_ref, xp_ref, *, H, S, B, BP):
    """Fused bidirectional-LSTM head.

    x_ref   : (2*S*BP, D) bf16  gathered embeddings for both sequences,
                                time-major, batch padded to BP (=8k) rows.
    wih_ref : (D, 8H)  bf16     fused input weights (gate-major fwd/rev cols).
    whh_ref : (2H, 8H) bf16     block-diagonal recurrent weights
                                (rows 0:H act on fwd h, rows H:2H on rev h).
    b_ref   : (1, 8H)  f32      folded b_ih + b_hh, same column order.
    whid/bhid, wout/bout        classifier head (pre-transposed).
    out_ref : (B, O)   f32      log-probabilities.
    xp_ref  : (2*S*BP, 8H) f32  VMEM scratch holding the one-shot input proj.
    """
    # --- one fused MXU matmul for every (sequence, direction, timestep) ------
    xp_ref[...] = (jnp.dot(x_ref[...], wih_ref[...],
                           preferred_element_type=jnp.float32) + b_ref[...])

    whh = whh_ref[...]                                        # (2H, 8H) bf16

    # Lane mask: inside each 2H gate block, first H lanes = forward direction.
    lane = lax.broadcasted_iota(jnp.int32, (1, 8 * H), 1)
    fwd_mask = (lane % (2 * H)) < H                           # (1, 8H) bool

    def run_sequence(h, c, seq):
        """One bidirectional pass; fwd & rev share a single recurrence loop.

        State layout (BP, 2H): cols [0:H] forward, [H:2H] reverse."""
        m = jnp.zeros((BP, 2 * H), jnp.float32)   # relu(h) >= 0 -> 0 is neutral
        base = seq * S * BP
        for t in range(S):            # unrolled: static, tile-aligned slices
            xf = xp_ref[pl.ds(base + t * BP, BP), :]            # fwd dir: time t
            xr = xp_ref[pl.ds(base + (S - 1 - t) * BP, BP), :]  # rev dir: time S-1-t
            xg = jnp.where(fwd_mask, xf, xr)                    # (BP, 8H)

            gates = xg + jnp.dot(h.astype(jnp.bfloat16), whh,
                                 preferred_element_type=jnp.float32)
            sg = jax.nn.sigmoid(gates)                # i | f | . | o lanes used
            gg = jnp.tanh(gates[:, 4 * H:6 * H])      # g gates, both directions
            c = sg[:, 2 * H:4 * H] * c + sg[:, 0:2 * H] * gg
            h = sg[:, 6 * H:8 * H] * jnp.tanh(c)
            m = jnp.maximum(m, jnp.maximum(h, 0.0))   # relu + running max-over-time
        return h, c, m

    zeros = jnp.zeros((BP, 2 * H), jnp.float32)
    h1, c1, m1 = run_sequence(zeros, zeros, 0)        # sequence 1: zero init state
    _, _, m2 = run_sequence(h1, c1, 1)                # sequence 2: seeded by seq 1

    # --- classifier head: hidden -> relu -> out -> log_softmax ---------------
    feat = jnp.concatenate([m1, m2], axis=-1)         # (BP, 4H)
    hid = (jnp.dot(feat.astype(jnp.bfloat16), whid_ref[...],
                   preferred_element_type=jnp.float32) + bhid_ref[...])
    logits = (jnp.dot(jnp.maximum(hid, 0.0).astype(jnp.bfloat16), wout_ref[...],
                      preferred_element_type=jnp.float32) + bout_ref[...])

    shifted = logits - jnp.max(logits, axis=-1, keepdims=True)
    lse = jnp.log(jnp.sum(jnp.exp(shifted), axis=-1, keepdims=True))
    out_ref[...] = (shifted - lse)[:B, :]             # drop batch-padding rows


# ------------------------------ JAX wrapper ---------------------------------


def batched_index_select(emb, pos):
    """emb: (B, S_full, D); pos: (B, S_sel) int -> (B, S_sel, D)."""
    return jax.vmap(lambda e, p: e[p])(emb, pos)


def fuse_lstm_params(wih_f_T, whh_f_T, b_f, wih_r_T, whh_r_T, b_r, H):
    """Fuse the two LSTM directions into gate-major [*_fwd | *_rev] columns.

    Returns (wih_fused (D,8H), whh_fused (2H,8H) block-diag, b_fused (1,8H))."""
    wih_cols, b_cols = [], []
    whh = jnp.zeros((2 * H, 8 * H), jnp.float32)
    for g in range(4):                       # PyTorch gate order (i, f, g, o)
        wih_cols += [wih_f_T[:, g * H:(g + 1) * H], wih_r_T[:, g * H:(g + 1) * H]]
        b_cols += [b_f[:, g * H:(g + 1) * H], b_r[:, g * H:(g + 1) * H]]
        whh = whh.at[0:H, (2 * g) * H:(2 * g + 1) * H].set(
            whh_f_T[:, g * H:(g + 1) * H])
        whh = whh.at[H:2 * H, (2 * g + 1) * H:(2 * g + 2) * H].set(
            whh_r_T[:, g * H:(g + 1) * H])
    return jnp.concatenate(wih_cols, -1), whh, jnp.concatenate(b_cols, -1)


def bilstm_forward(bert_emb1, bert_emb2, pos1, pos2, params, *, H):
    """bert_emb*: (B, S_full, D) concat-all BERT hidden states (synthetic).
    pos*: (B, S_sel) gather indices. Returns (B, output_size) log-probs."""
    B, _, D = bert_emb1.shape
    S = pos1.shape[1]
    BP = ((B + 7) // 8) * 8                   # pad batch to full sublane tiles
    O = params["bout"].shape[-1]

    def prep(emb, pos):
        x = batched_index_select(emb, pos)            # (B, S, D)
        x = jnp.transpose(x, (1, 0, 2))               # time-major (S, B, D)
        return jnp.pad(x, ((0, 0), (0, BP - B), (0, 0)))

    # Both sequences, flattened in the wrapper (free plumbing) to (2*S*BP, D).
    x_all = jnp.concatenate([prep(bert_emb1, pos1), prep(bert_emb2, pos2)], axis=0)
    x_all = x_all.reshape(2 * S * BP, D).astype(jnp.bfloat16)

    wih, whh, b = fuse_lstm_params(params["wih_f_T"], params["whh_f_T"], params["b_f"],
                                   params["wih_r_T"], params["whh_r_T"], params["b_r"], H)

    ins = (x_all, wih.astype(jnp.bfloat16), whh.astype(jnp.bfloat16), b,
           params["whid_T"].astype(jnp.bfloat16), params["bhid"],
           params["wout_T"].astype(jnp.bfloat16), params["bout"])

    vmem = pl.BlockSpec(memory_space=pltpu.MemorySpace.VMEM)
    return pl.pallas_call(
        functools.partial(bilstm_head_kernel, H=H, S=S, B=B, BP=BP),
        out_shape=jax.ShapeDtypeStruct((B, O), jnp.float32),
        in_specs=[vmem] * len(ins),
        out_specs=vmem,
        scratch_shapes=[pltpu.VMEM((2 * S * BP, 8 * H), jnp.float32)],
    )(*ins)


# --------------------------- pure-JAX reference ------------------------------
# Mirrors the kernel's precision policy (bf16 matmul operands, f32 accumulation
# and f32 gate/cell math) so the comparison is apples-to-apples.


def _lstm_dir_ref(xseq, wih_T, whh_T, b, h0, c0, H, reverse):
    S = xseq.shape[0]
    order = range(S - 1, -1, -1) if reverse else range(S)
    h, c = h0, c0
    m = jnp.zeros_like(h0)
    wih_bf = wih_T.astype(jnp.bfloat16)
    whh_bf = whh_T.astype(jnp.bfloat16)
    for t in order:
        gates = (jnp.dot(xseq[t].astype(jnp.bfloat16), wih_bf,
                         preferred_element_type=jnp.float32) + b
                 + jnp.dot(h.astype(jnp.bfloat16), whh_bf,
                           preferred_element_type=jnp.float32))
        ig = jax.nn.sigmoid(gates[:, 0 * H:1 * H])
        fg = jax.nn.sigmoid(gates[:, 1 * H:2 * H])
        gg = jnp.tanh(gates[:, 2 * H:3 * H])
        og = jax.nn.sigmoid(gates[:, 3 * H:4 * H])
        c = fg * c + ig * gg
        h = og * jnp.tanh(c)
        m = jnp.maximum(m, jnp.maximum(h, 0.0))
    return h, c, m


def bilstm_forward_ref(bert_emb1, bert_emb2, pos1, pos2, params, *, H):
    x1 = jnp.transpose(batched_index_select(bert_emb1, pos1), (1, 0, 2))
    x2 = jnp.transpose(batched_index_select(bert_emb2, pos2), (1, 0, 2))
    B = bert_emb1.shape[0]
    zeros = jnp.zeros((B, H), jnp.float32)
    p = params

    hf1, cf1, mf1 = _lstm_dir_ref(x1, p["wih_f_T"], p["whh_f_T"], p["b_f"], zeros, zeros, H, False)
    hr1, cr1, mr1 = _lstm_dir_ref(x1, p["wih_r_T"], p["whh_r_T"], p["b_r"], zeros, zeros, H, True)
    out1 = jnp.concatenate([mf1, mr1], axis=-1)
    _, _, mf2 = _lstm_dir_ref(x2, p["wih_f_T"], p["whh_f_T"], p["b_f"], hf1, cf1, H, False)
    _, _, mr2 = _lstm_dir_ref(x2, p["wih_r_T"], p["whh_r_T"], p["b_r"], hr1, cr1, H, True)
    out2 = jnp.concatenate([mf2, mr2], axis=-1)

    feat = jnp.concatenate([out1, out2], axis=-1)
    hid = (jnp.dot(feat.astype(jnp.bfloat16), p["whid_T"].astype(jnp.bfloat16),
                   preferred_element_type=jnp.float32) + p["bhid"])
    logits = (jnp.dot(jnp.maximum(hid, 0.0).astype(jnp.bfloat16),
                      p["wout_T"].astype(jnp.bfloat16),
                      preferred_element_type=jnp.float32) + p["bout"])
    return jax.nn.log_softmax(logits, axis=-1)


# ---------------------------------- main -------------------------------------


if __name__ == "__main__":
    # Module hyper-params (small, consistent with the forward pass):
    input_size = 32            # per-layer BERT hidden size (synthetic)
    hidden_size = 32           # H
    output_size = 8            # number of classes
    concat_all = True          # => LSTM input D = 4 * input_size
    D = 4 * input_size         # 128
    H = hidden_size
    B, S_full, S_sel = 2, 16, 8

    key = jax.random.PRNGKey(0)
    ks = jax.random.split(key, 20)
    u = lambda k, shape: jax.random.uniform(k, shape, jnp.float32, -0.1, 0.1)

    # Synthetic "BERT" outputs (already concat of last 4 hidden states -> D).
    bert_emb1 = u(ks[0], (B, S_full, D))
    bert_emb2 = u(ks[1], (B, S_full, D))
    pos1 = jax.random.randint(ks[2], (B, S_sel), 0, S_full)
    pos2 = jax.random.randint(ks[3], (B, S_sel), 0, S_full)

    # LSTM params (PyTorch layout (4H, in)), stored transposed for the kernel;
    # b_ih and b_hh are folded into one bias.
    params = {
        "wih_f_T": u(ks[4], (4 * H, D)).T,
        "whh_f_T": u(ks[5], (4 * H, H)).T,
        "b_f": (u(ks[6], (4 * H,)) + u(ks[7], (4 * H,))).reshape(1, 4 * H),
        "wih_r_T": u(ks[8], (4 * H, D)).T,
        "whh_r_T": u(ks[9], (4 * H, H)).T,
        "b_r": (u(ks[10], (4 * H,)) + u(ks[11], (4 * H,))).reshape(1, 4 * H),
        # hidden: Linear(4H -> 2H); out: Linear(2H -> output_size)
        "whid_T": u(ks[12], (2 * H, 4 * H)).T,
        "bhid": u(ks[13], (2 * H,)).reshape(1, 2 * H),
        "wout_T": u(ks[14], (output_size, 2 * H)).T,
        "bout": u(ks[15], (output_size,)).reshape(1, output_size),
    }

    out = bilstm_forward(bert_emb1, bert_emb2, pos1, pos2, params, H=H)
    out = jax.block_until_ready(out)

    ref = bilstm_forward_ref(bert_emb1, bert_emb2, pos1, pos2, params, H=H)
    assert out.shape == (B, output_size)
    assert jnp.allclose(out, ref, atol=1e-3, rtol=1e-3), "kernel does not match reference"

    print("KERNEL_OK")
</pallas_src>

<mosaic_0001>
module attributes {stable_mosaic.version = 11 : i64} {
  func.func @bilstm_head_kernel(%arg0: memref<128x128xbf16, #tpu.memory_space<vmem>>, %arg1: memref<128x256xbf16, #tpu.memory_space<vmem>>, %arg2: memref<64x256xbf16, #tpu.memory_space<vmem>>, %arg3: memref<1x256xf32, #tpu.memory_space<vmem>>, %arg4: memref<128x64xbf16, #tpu.memory_space<vmem>>, %arg5: memref<1x64xf32, #tpu.memory_space<vmem>>, %arg6: memref<64x8xbf16, #tpu.memory_space<vmem>>, %arg7: memref<1x8xf32, #tpu.memory_space<vmem>>, %arg8: memref<2x8xf32, #tpu.memory_space<vmem>>, %arg9: memref<128x256xf32, #tpu.memory_space<vmem>>) attributes {dimension_semantics = [], scalar_prefetch = 0 : i64, scratch_operands = 1 : i64, tpu.core_type = #tpu.core_type<tc>} {
    %c0 = arith.constant 0 : index
    %c0_0 = arith.constant 0 : index
    %0 = vector.load %arg0[%c0, %c0_0] : memref<128x128xbf16, #tpu.memory_space<vmem>>, vector<128x128xbf16>
    %c0_1 = arith.constant 0 : index
    %c0_2 = arith.constant 0 : index
    %1 = vector.load %arg1[%c0_1, %c0_2] : memref<128x256xbf16, #tpu.memory_space<vmem>>, vector<128x256xbf16>
    %cst = arith.constant dense<0.000000e+00> : vector<128x256xf32>
    %2 = tpu.matmul %0, %1, %cst {dimension_numbers = #tpu.dot_dimension_numbers<[1], [0], [0], [1], [0, 0, 1, 1], [], []>} : vector<128x128xbf16>, vector<128x256xbf16>, vector<128x256xf32> -> vector<128x256xf32>
    %c0_3 = arith.constant 0 : index
    %c0_4 = arith.constant 0 : index
    %3 = vector.load %arg3[%c0_3, %c0_4] : memref<1x256xf32, #tpu.memory_space<vmem>>, vector<1x256xf32>
    %4 = vector.broadcast %3 : vector<1x256xf32> to vector<128x256xf32>
    %5 = arith.addf %2, %4 : vector<128x256xf32>
    %c0_5 = arith.constant 0 : index
    %c0_6 = arith.constant 0 : index
    %6 = vector.load %arg9[%c0_5, %c0_6] : memref<128x256xf32, #tpu.memory_space<vmem>>, vector<128x256xf32>
    tpu.vector_store %arg9[%c0_5, %c0_6], %5 {strides = array<i32>} : memref<128x256xf32, #tpu.memory_space<vmem>>, vector<128x256xf32>,
    %c0_7 = arith.constant 0 : index
    %c0_8 = arith.constant 0 : index
    %7 = vector.load %arg2[%c0_7, %c0_8] : memref<64x256xbf16, #tpu.memory_space<vmem>>, vector<64x256xbf16>
    %8 = tpu.iota {dimensions = array<i32: 1>} : vector<1x256xi32>
    %c64_i32 = arith.constant 64 : i32
    %c0_i32 = arith.constant 0 : i32
    %9 = arith.cmpi eq, %c64_i32, %c0_i32 : i32
    %c1_i32 = arith.constant 1 : i32
    %10 = arith.select %9, %c1_i32, %c64_i32 : i32
    %11 = vector.broadcast %10 : i32 to vector<1x256xi32>
    %12 = arith.remsi %8, %11 : vector<1x256xi32>
    %c0_i32_9 = arith.constant 0 : i32
    %13 = vector.broadcast %c0_i32_9 : i32 to vector<1x256xi32>
    %14 = arith.cmpi ne, %12, %13 : vector<1x256xi32>
    %c0_i32_10 = arith.constant 0 : i32
    %15 = vector.broadcast %c0_i32_10 : i32 to vector<1x256xi32>
    %16 = arith.cmpi slt, %12, %15 : vector<1x256xi32>
    %c0_i32_11 = arith.constant 0 : i32
    %17 = arith.cmpi slt, %10, %c0_i32_11 : i32
    %18 = vector.broadcast %17 : i1 to vector<1x256xi1>
    %19 = vector.broadcast %18 : vector<1x256xi1> to vector<1x256xi1>
    %20 = arith.xori %16, %19 : vector<1x256xi1>
    %21 = arith.andi %20, %14 : vector<1x256xi1>
    %22 = vector.broadcast %10 : i32 to vector<1x256xi32>
    %23 = arith.addi %12, %22 : vector<1x256xi32>
    %24 = arith.select %21, %23, %12 : vector<1x256xi1>, vector<1x256xi32>
    %c32_i32 = arith.constant 32 : i32
    %25 = vector.broadcast %c32_i32 : i32 to vector<1x256xi32>
    %26 = arith.cmpi slt, %24, %25 : vector<1x256xi32>
    %cst_12 = arith.constant 0.000000e+00 : f32
    %27 = vector.broadcast %cst_12 : f32 to vector<8x64xf32>
    %cst_13 = arith.constant 0.000000e+00 : f32
    %28 = vector.broadcast %cst_13 : f32 to vector<8x64xf32>
    %c0_14 = arith.constant 0 : index
    %c0_15 = arith.constant 0 : index
    %29 = vector.load %arg9[%c0_14, %c0_15] : memref<128x256xf32, #tpu.memory_space<vmem>>, vector<8x256xf32>
    %c56 = arith.constant 56 : index
    %c0_16 = arith.constant 0 : index
    %30 = vector.load %arg9[%c56, %c0_16] : memref<128x256xf32, #tpu.memory_space<vmem>>, vector<8x256xf32>
    %31 = vector.shape_cast %26 : vector<1x256xi1> to vector<1x256xi1>
    %32 = vector.broadcast %31 : vector<1x256xi1> to vector<8x256xi1>
    %33 = arith.select %32, %29, %30 : vector<8x256xi1>, vector<8x256xf32>
    %34 = arith.truncf %27 : vector<8x64xf32> to vector<8x64xbf16>
    %cst_17 = arith.constant dense<0.000000e+00> : vector<8x256xf32>
    %35 = tpu.matmul %34, %7, %cst_17 {dimension_numbers = #tpu.dot_dimension_numbers<[1], [0], [0], [1], [0, 0, 1, 1], [], []>} : vector<8x64xbf16>, vector<64x256xbf16>, vector<8x256xf32> -> vector<8x256xf32>
    %36 = arith.addf %33, %35 : vector<8x256xf32>
    %37 = arith.negf %36 : vector<8x256xf32>
    %38 = math.exp %37 : vector<8x256xf32>
    %cst_18 = arith.constant 1.000000e+00 : f32
    %39 = vector.broadcast %cst_18 : f32 to vector<8x256xf32>
    %40 = arith.addf %39, %38 : vector<8x256xf32>
    %41 = arith.divf %39, %40 : vector<8x256xf32>
    %42 = vector.extract_strided_slice %36 {offsets = [0, 128], sizes = [8, 64], strides = [1, 1]} : vector<8x256xf32> to vector<8x64xf32>
    %43 = math.tanh %42 : vector<8x64xf32>
    %44 = vector.extract_strided_slice %41 {offsets = [0, 64], sizes = [8, 64], strides = [1, 1]} : vector<8x256xf32> to vector<8x64xf32>
    %45 = arith.mulf %44, %27 : vector<8x64xf32>
    %46 = vector.extract_strided_slice %41 {offsets = [0, 0], sizes = [8, 64], strides = [1, 1]} : vector<8x256xf32> to vector<8x64xf32>
    %47 = arith.mulf %46, %43 : vector<8x64xf32>
    %48 = arith.addf %45, %47 : vector<8x64xf32>
    %49 = vector.extract_strided_slice %41 {offsets = [0, 192], sizes = [8, 64], strides = [1, 1]} : vector<8x256xf32> to vector<8x64xf32>
    %50 = math.tanh %48 : vector<8x64xf32>
    %51 = arith.mulf %49, %50 : vector<8x64xf32>
    %cst_19 = arith.constant 0.000000e+00 : f32
    %52 = vector.broadcast %cst_19 : f32 to vector<8x64xf32>
    %53 = arith.maximumf %51, %52 : vector<8x64xf32>
    %54 = arith.maximumf %28, %53 : vector<8x64xf32>
    %c8 = arith.constant 8 : index
    %c0_20 = arith.constant 0 : index
    %55 = vector.load %arg9[%c8, %c0_20] : memref<128x256xf32, #tpu.memory_space<vmem>>, vector<8x256xf32>
    %c48 = arith.constant 48 : index
    %c0_21 = arith.constant 0 : index
    %56 = vector.load %arg9[%c48, %c0_21] : memref<128x256xf32, #tpu.memory_space<vmem>>, vector<8x256xf32>
    %57 = vector.shape_cast %26 : vector<1x256xi1> to vector<1x256xi1>
    %58 = vector.broadcast %57 : vector<1x256xi1> to vector<8x256xi1>
    %59 = arith.select %58, %55, %56 : vector<8x256xi1>, vector<8x256xf32>
    %60 = arith.truncf %51 : vector<8x64xf32> to vector<8x64xbf16>
    %cst_22 = arith.constant dense<0.000000e+00> : vector<8x256xf32>
    %61 = tpu.matmul %60, %7, %cst_22 {dimension_numbers = #tpu.dot_dimension_numbers<[1], [0], [0], [1], [0, 0, 1, 1], [], []>} : vector<8x64xbf16>, vector<64x256xbf16>, vector<8x256xf32> -> vector<8x256xf32>
    %62 = arith.addf %59, %61 : vector<8x256xf32>
    %63 = arith.negf %62 : vector<8x256xf32>
    %64 = math.exp %63 : vector<8x256xf32>
    %cst_23 = arith.constant 1.000000e+00 : f32
    %65 = vector.broadcast %cst_23 : f32 to vector<8x256xf32>
    %66 = arith.addf %65, %64 : vector<8x256xf32>
    %67 = arith.divf %65, %66 : vector<8x256xf32>
    %68 = vector.extract_strided_slice %62 {offsets = [0, 128], sizes = [8, 64], strides = [1, 1]} : vector<8x256xf32> to vector<8x64xf32>
    %69 = math.tanh %68 : vector<8x64xf32>
    %70 = vector.extract_strided_slice %67 {offsets = [0, 64], sizes = [8, 64], strides = [1, 1]} : vector<8x256xf32> to vector<8x64xf32>
    %71 = arith.mulf %70, %48 : vector<8x64xf32>
    %72 = vector.extract_strided_slice %67 {offsets = [0, 0], sizes = [8, 64], strides = [1, 1]} : vector<8x256xf32> to vector<8x64xf32>
    %73 = arith.mulf %72, %69 : vector<8x64xf32>
    %74 = arith.addf %71, %73 : vector<8x64xf32>
    %75 = vector.extract_strided_slice %67 {offsets = [0, 192], sizes = [8, 64], strides = [1, 1]} : vector<8x256xf32> to vector<8x64xf32>
    %76 = math.tanh %74 : vector<8x64xf32>
    %77 = arith.mulf %75, %76 : vector<8x64xf32>
    %cst_24 = arith.constant 0.000000e+00 : f32
    %78 = vector.broadcast %cst_24 : f32 to vector<8x64xf32>
    %79 = arith.maximumf %77, %78 : vector<8x64xf32>
    %80 = arith.maximumf %54, %79 : vector<8x64xf32>
    %c16 = arith.constant 16 : index
    %c0_25 = arith.constant 0 : index
    %81 = vector.load %arg9[%c16, %c0_25] : memref<128x256xf32, #tpu.memory_space<vmem>>, vector<8x256xf32>
    %c40 = arith.constant 40 : index
    %c0_26 = arith.constant 0 : index
    %82 = vector.load %arg9[%c40, %c0_26] : memref<128x256xf32, #tpu.memory_space<vmem>>, vector<8x256xf32>
    %83 = vector.shape_cast %26 : vector<1x256xi1> to vector<1x256xi1>
    %84 = vector.broadcast %83 : vector<1x256xi1> to vector<8x256xi1>
    %85 = arith.select %84, %81, %82 : vector<8x256xi1>, vector<8x256xf32>
    %86 = arith.truncf %77 : vector<8x64xf32> to vector<8x64xbf16>
    %cst_27 = arith.constant dense<0.000000e+00> : vector<8x256xf32>
    %87 = tpu.matmul %86, %7, %cst_27 {dimension_numbers = #tpu.dot_dimension_numbers<[1], [0], [0], [1], [0, 0, 1, 1], [], []>} : vector<8x64xbf16>, vector<64x256xbf16>, vector<8x256xf32> -> vector<8x256xf32>
    %88 = arith.addf %85, %87 : vector<8x256xf32>
    %89 = arith.negf %88 : vector<8x256xf32>
    %90 = math.exp %89 : vector<8x256xf32>
    %cst_28 = arith.constant 1.000000e+00 : f32
    %91 = vector.broadcast %cst_28 : f32 to vector<8x256xf32>
    %92 = arith.addf %91, %90 : vector<8x256xf32>
    %93 = arith.divf %91, %92 : vector<8x256xf32>
    %94 = vector.extract_strided_slice %88 {offsets = [0, 128], sizes = [8, 64], strides = [1, 1]} : vector<8x256xf32> to vector<8x64xf32>
    %95 = math.tanh %94 : vector<8x64xf32>
    %96 = vector.extract_strided_slice %93 {offsets = [0, 64], sizes = [8, 64], strides = [1, 1]} : vector<8x256xf32> to vector<8x64xf32>
    %97 = arith.mulf %96, %74 : vector<8x64xf32>
    %98 = vector.extract_strided_slice %93 {offsets = [0, 0], sizes = [8, 64], strides = [1, 1]} : vector<8x256xf32> to vector<8x64xf32>
    %99 = arith.mulf %98, %95 : vector<8x64xf32>
    %100 = arith.addf %97, %99 : vector<8x64xf32>
    %101 = vector.extract_strided_slice %93 {offsets = [0, 192], sizes = [8, 64], strides = [1, 1]} : vector<8x256xf32> to vector<8x64xf32>
    %102 = math.tanh %100 : vector<8x64xf32>
    %103 = arith.mulf %101, %102 : vector<8x64xf32>
    %cst_29 = arith.constant 0.000000e+00 : f32
    %104 = vector.broadcast %cst_29 : f32 to vector<8x64xf32>
    %105 = arith.maximumf %103, %104 : vector<8x64xf32>
    %106 = arith.maximumf %80, %105 : vector<8x64xf32>
    %c24 = arith.constant 24 : index
    %c0_30 = arith.constant 0 : index
    %107 = vector.load %arg9[%c24, %c0_30] : memref<128x256xf32, #tpu.memory_space<vmem>>, vector<8x256xf32>
    %c32 = arith.constant 32 : index
    %c0_31 = arith.constant 0 : index
    %108 = vector.load %arg9[%c32, %c0_31] : memref<128x256xf32, #tpu.memory_space<vmem>>, vector<8x256xf32>
    %109 = vector.shape_cast %26 : vector<1x256xi1> to vector<1x256xi1>
    %110 = vector.broadcast %109 : vector<1x256xi1> to vector<8x256xi1>
    %111 = arith.select %110, %107, %108 : vector<8x256xi1>, vector<8x256xf32>
    %112 = arith.truncf %103 : vector<8x64xf32> to vector<8x64xbf16>
    %cst_32 = arith.constant dense<0.000000e+00> : vector<8x256xf32>
    %113 = tpu.matmul %112, %7, %cst_32 {dimension_numbers = #tpu.dot_dimension_numbers<[1], [0], [0], [1], [0, 0, 1, 1], [], []>} : vector<8x64xbf16>, vector<64x256xbf16>, vector<8x256xf32> -> vector<8x256xf32>
    %114 = arith.addf %111, %113 : vector<8x256xf32>
    %115 = arith.negf %114 : vector<8x256xf32>
    %116 = math.exp %115 : vector<8x256xf32>
    %cst_33 = arith.constant 1.000000e+00 : f32
    %117 = vector.broadcast %cst_33 : f32 to vector<8x256xf32>
    %118 = arith.addf %117, %116 : vector<8x256xf32>
    %119 = arith.divf %117, %118 : vector<8x256xf32>
    %120 = vector.extract_strided_slice %114 {offsets = [0, 128], sizes = [8, 64], strides = [1, 1]} : vector<8x256xf32> to vector<8x64xf32>
    %121 = math.tanh %120 : vector<8x64xf32>
    %122 = vector.extract_strided_slice %119 {offsets = [0, 64], sizes = [8, 64], strides = [1, 1]} : vector<8x256xf32> to vector<8x64xf32>
    %123 = arith.mulf %122, %100 : vector<8x64xf32>
    %124 = vector.extract_strided_slice %119 {offsets = [0, 0], sizes = [8, 64], strides = [1, 1]} : vector<8x256xf32> to vector<8x64xf32>
    %125 = arith.mulf %124, %121 : vector<8x64xf32>
    %126 = arith.addf %123, %125 : vector<8x64xf32>
    %127 = vector.extract_strided_slice %119 {offsets = [0, 192], sizes = [8, 64], strides = [1, 1]} : vector<8x256xf32> to vector<8x64xf32>
    %128 = math.tanh %126 : vector<8x64xf32>
    %129 = arith.mulf %127, %128 : vector<8x64xf32>
    %cst_34 = arith.constant 0.000000e+00 : f32
    %130 = vector.broadcast %cst_34 : f32 to vector<8x64xf32>
    %131 = arith.maximumf %129, %130 : vector<8x64xf32>
    %132 = arith.maximumf %106, %131 : vector<8x64xf32>
    %c32_35 = arith.constant 32 : index
    %c0_36 = arith.constant 0 : index
    %133 = vector.load %arg9[%c32_35, %c0_36] : memref<128x256xf32, #tpu.memory_space<vmem>>, vector<8x256xf32>
    %c24_37 = arith.constant 24 : index
    %c0_38 = arith.constant 0 : index
    %134 = vector.load %arg9[%c24_37, %c0_38] : memref<128x256xf32, #tpu.memory_space<vmem>>, vector<8x256xf32>
    %135 = vector.shape_cast %26 : vector<1x256xi1> to vector<1x256xi1>
    %136 = vector.broadcast %135 : vector<1x256xi1> to vector<8x256xi1>
    %137 = arith.select %136, %133, %134 : vector<8x256xi1>, vector<8x256xf32>
    %138 = arith.truncf %129 : vector<8x64xf32> to vector<8x64xbf16>
    %cst_39 = arith.constant dense<0.000000e+00> : vector<8x256xf32>
    %139 = tpu.matmul %138, %7, %cst_39 {dimension_numbers = #tpu.dot_dimension_numbers<[1], [0], [0], [1], [0, 0, 1, 1], [], []>} : vector<8x64xbf16>, vector<64x256xbf16>, vector<8x256xf32> -> vector<8x256xf32>
    %140 = arith.addf %137, %139 : vector<8x256xf32>
    %141 = arith.negf %140 : vector<8x256xf32>
    %142 = math.exp %141 : vector<8x256xf32>
    %cst_40 = arith.constant 1.000000e+00 : f32
    %143 = vector.broadcast %cst_40 : f32 to vector<8x256xf32>
    %144 = arith.addf %143, %142 : vector<8x256xf32>
    %145 = arith.divf %143, %144 : vector<8x256xf32>
    %146 = vector.extract_strided_slice %140 {offsets = [0, 128], sizes = [8, 64], strides = [1, 1]} : vector<8x256xf32> to vector<8x64xf32>
    %147 = math.tanh %146 : vector<8x64xf32>
    %148 = vector.extract_strided_slice %145 {offsets = [0, 64], sizes = [8, 64], strides = [1, 1]} : vector<8x256xf32> to vector<8x64xf32>
    %149 = arith.mulf %148, %126 : vector<8x64xf32>
    %150 = vector.extract_strided_slice %145 {offsets = [0, 0], sizes = [8, 64], strides = [1, 1]} : vector<8x256xf32> to vector<8x64xf32>
    %151 = arith.mulf %150, %147 : vector<8x64xf32>
    %152 = arith.addf %149, %151 : vector<8x64xf32>
    %153 = vector.extract_strided_slice %145 {offsets = [0, 192], sizes = [8, 64], strides = [1, 1]} : vector<8x256xf32> to vector<8x64xf32>
    %154 = math.tanh %152 : vector<8x64xf32>
    %155 = arith.mulf %153, %154 : vector<8x64xf32>
    %cst_41 = arith.constant 0.000000e+00 : f32
    %156 = vector.broadcast %cst_41 : f32 to vector<8x64xf32>
    %157 = arith.maximumf %155, %156 : vector<8x64xf32>
    %158 = arith.maximumf %132, %157 : vector<8x64xf32>
    %c40_42 = arith.constant 40 : index
    %c0_43 = arith.constant 0 : index
    %159 = vector.load %arg9[%c40_42, %c0_43] : memref<128x256xf32, #tpu.memory_space<vmem>>, vector<8x256xf32>
    %c16_44 = arith.constant 16 : index
    %c0_45 = arith.constant 0 : index
    %160 = vector.load %arg9[%c16_44, %c0_45] : memref<128x256xf32, #tpu.memory_space<vmem>>, vector<8x256xf32>
    %161 = vector.shape_cast %26 : vector<1x256xi1> to vector<1x256xi1>
    %162 = vector.broadcast %161 : vector<1x256xi1> to vector<8x256xi1>
    %163 = arith.select %162, %159, %160 : vector<8x256xi1>, vector<8x256xf32>
    %164 = arith.truncf %155 : vector<8x64xf32> to vector<8x64xbf16>
    %cst_46 = arith.constant dense<0.000000e+00> : vector<8x256xf32>
    %165 = tpu.matmul %164, %7, %cst_46 {dimension_numbers = #tpu.dot_dimension_numbers<[1], [0], [0], [1], [0, 0, 1, 1], [], []>} : vector<8x64xbf16>, vector<64x256xbf16>, vector<8x256xf32> -> vector<8x256xf32>
    %166 = arith.addf %163, %165 : vector<8x256xf32>
    %167 = arith.negf %166 : vector<8x256xf32>
    %168 = math.exp %167 : vector<8x256xf32>
    %cst_47 = arith.constant 1.000000e+00 : f32
    %169 = vector.broadcast %cst_47 : f32 to vector<8x256xf32>
    %170 = arith.addf %169, %168 : vector<8x256xf32>
    %171 = arith.divf %169, %170 : vector<8x256xf32>
    %172 = vector.extract_strided_slice %166 {offsets = [0, 128], sizes = [8, 64], strides = [1, 1]} : vector<8x256xf32> to vector<8x64xf32>
    %173 = math.tanh %172 : vector<8x64xf32>
    %174 = vector.extract_strided_slice %171 {offsets = [0, 64], sizes = [8, 64], strides = [1, 1]} : vector<8x256xf32> to vector<8x64xf32>
    %175 = arith.mulf %174, %152 : vector<8x64xf32>
    %176 = vector.extract_strided_slice %171 {offsets = [0, 0], sizes = [8, 64], strides = [1, 1]} : vector<8x256xf32> to vector<8x64xf32>
    %177 = arith.mulf %176, %173 : vector<8x64xf32>
    %178 = arith.addf %175, %177 : vector<8x64xf32>
    %179 = vector.extract_strided_slice %171 {offsets = [0, 192], sizes = [8, 64], strides = [1, 1]} : vector<8x256xf32> to vector<8x64xf32>
    %180 = math.tanh %178 : vector<8x64xf32>
    %181 = arith.mulf %179, %180 : vector<8x64xf32>
    %cst_48 = arith.constant 0.000000e+00 : f32
    %182 = vector.broadcast %cst_48 : f32 to vector<8x64xf32>
    %183 = arith.maximumf %181, %182 : vector<8x64xf32>
    %184 = arith.maximumf %158, %183 : vector<8x64xf32>
    %c48_49 = arith.constant 48 : index
    %c0_50 = arith.constant 0 : index
    %185 = vector.load %arg9[%c48_49, %c0_50] : memref<128x256xf32, #tpu.memory_space<vmem>>, vector<8x256xf32>
    %c8_51 = arith.constant 8 : index
    %c0_52 = arith.constant 0 : index
    %186 = vector.load %arg9[%c8_51, %c0_52] : memref<128x256xf32, #tpu.memory_space<vmem>>, vector<8x256xf32>
    %187 = vector.shape_cast %26 : vector<1x256xi1> to vector<1x256xi1>
    %188 = vector.broadcast %187 : vector<1x256xi1> to vector<8x256xi1>
    %189 = arith.select %188, %185, %186 : vector<8x256xi1>, vector<8x256xf32>
    %190 = arith.truncf %181 : vector<8x64xf32> to vector<8x64xbf16>
    %cst_53 = arith.constant dense<0.000000e+00> : vector<8x256xf32>
    %191 = tpu.matmul %190, %7, %cst_53 {dimension_numbers = #tpu.dot_dimension_numbers<[1], [0], [0], [1], [0, 0, 1, 1], [], []>} : vector<8x64xbf16>, vector<64x256xbf16>, vector<8x256xf32> -> vector<8x256xf32>
    %192 = arith.addf %189, %191 : vector<8x256xf32>
    %193 = arith.negf %192 : vector<8x256xf32>
    %194 = math.exp %193 : vector<8x256xf32>
    %cst_54 = arith.constant 1.000000e+00 : f32
    %195 = vector.broadcast %cst_54 : f32 to vector<8x256xf32>
    %196 = arith.addf %195, %194 : vector<8x256xf32>
    %197 = arith.divf %195, %196 : vector<8x256xf32>
    %198 = vector.extract_strided_slice %192 {offsets = [0, 128], sizes = [8, 64], strides = [1, 1]} : vector<8x256xf32> to vector<8x64xf32>
    %199 = math.tanh %198 : vector<8x64xf32>
    %200 = vector.extract_strided_slice %197 {offsets = [0, 64], sizes = [8, 64], strides = [1, 1]} : vector<8x256xf32> to vector<8x64xf32>
    %201 = arith.mulf %200, %178 : vector<8x64xf32>
    %202 = vector.extract_strided_slice %197 {offsets = [0, 0], sizes = [8, 64], strides = [1, 1]} : vector<8x256xf32> to vector<8x64xf32>
    %203 = arith.mulf %202, %199 : vector<8x64xf32>
    %204 = arith.addf %201, %203 : vector<8x64xf32>
    %205 = vector.extract_strided_slice %197 {offsets = [0, 192], sizes = [8, 64], strides = [1, 1]} : vector<8x256xf32> to vector<8x64xf32>
    %206 = math.tanh %204 : vector<8x64xf32>
    %207 = arith.mulf %205, %206 : vector<8x64xf32>
    %cst_55 = arith.constant 0.000000e+00 : f32
    %208 = vector.broadcast %cst_55 : f32 to vector<8x64xf32>
    %209 = arith.maximumf %207, %208 : vector<8x64xf32>
    %210 = arith.maximumf %184, %209 : vector<8x64xf32>
    %c56_56 = arith.constant 56 : index
    %c0_57 = arith.constant 0 : index
    %211 = vector.load %arg9[%c56_56, %c0_57] : memref<128x256xf32, #tpu.memory_space<vmem>>, vector<8x256xf32>
    %c0_58 = arith.constant 0 : index
    %c0_59 = arith.constant 0 : index
    %212 = vector.load %arg9[%c0_58, %c0_59] : memref<128x256xf32, #tpu.memory_space<vmem>>, vector<8x256xf32>
    %213 = vector.shape_cast %26 : vector<1x256xi1> to vector<1x256xi1>
    %214 = vector.broadcast %213 : vector<1x256xi1> to vector<8x256xi1>
    %215 = arith.select %214, %211, %212 : vector<8x256xi1>, vector<8x256xf32>
    %216 = arith.truncf %207 : vector<8x64xf32> to vector<8x64xbf16>
    %cst_60 = arith.constant dense<0.000000e+00> : vector<8x256xf32>
    %217 = tpu.matmul %216, %7, %cst_60 {dimension_numbers = #tpu.dot_dimension_numbers<[1], [0], [0], [1], [0, 0, 1, 1], [], []>} : vector<8x64xbf16>, vector<64x256xbf16>, vector<8x256xf32> -> vector<8x256xf32>
    %218 = arith.addf %215, %217 : vector<8x256xf32>
    %219 = arith.negf %218 : vector<8x256xf32>
    %220 = math.exp %219 : vector<8x256xf32>
    %cst_61 = arith.constant 1.000000e+00 : f32
    %221 = vector.broadcast %cst_61 : f32 to vector<8x256xf32>
    %222 = arith.addf %221, %220 : vector<8x256xf32>
    %223 = arith.divf %221, %222 : vector<8x256xf32>
    %224 = vector.extract_strided_slice %218 {offsets = [0, 128], sizes = [8, 64], strides = [1, 1]} : vector<8x256xf32> to vector<8x64xf32>
    %225 = math.tanh %224 : vector<8x64xf32>
    %226 = vector.extract_strided_slice %223 {offsets = [0, 64], sizes = [8, 64], strides = [1, 1]} : vector<8x256xf32> to vector<8x64xf32>
    %227 = arith.mulf %226, %204 : vector<8x64xf32>
    %228 = vector.extract_strided_slice %223 {offsets = [0, 0], sizes = [8, 64], strides = [1, 1]} : vector<8x256xf32> to vector<8x64xf32>
    %229 = arith.mulf %228, %225 : vector<8x64xf32>
    %230 = arith.addf %227, %229 : vector<8x64xf32>
    %231 = vector.extract_strided_slice %223 {offsets = [0, 192], sizes = [8, 64], strides = [1, 1]} : vector<8x256xf32> to vector<8x64xf32>
    %232 = math.tanh %230 : vector<8x64xf32>
    %233 = arith.mulf %231, %232 : vector<8x64xf32>
    %cst_62 = arith.constant 0.000000e+00 : f32
    %234 = vector.broadcast %cst_62 : f32 to vector<8x64xf32>
    %235 = arith.maximumf %233, %234 : vector<8x64xf32>
    %236 = arith.maximumf %210, %235 : vector<8x64xf32>
    %cst_63 = arith.constant 0.000000e+00 : f32
    %237 = vector.broadcast %cst_63 : f32 to vector<8x64xf32>
    %c64 = arith.constant 64 : index
    %c0_64 = arith.constant 0 : index
    %238 = vector.load %arg9[%c64, %c0_64] : memref<128x256xf32, #tpu.memory_space<vmem>>, vector<8x256xf32>
    %c120 = arith.constant 120 : index
    %c0_65 = arith.constant 0 : index
    %239 = vector.load %arg9[%c120, %c0_65] : memref<128x256xf32, #tpu.memory_space<vmem>>, vector<8x256xf32>
    %240 = vector.shape_cast %26 : vector<1x256xi1> to vector<1x256xi1>
    %241 = vector.broadcast %240 : vector<1x256xi1> to vector<8x256xi1>
    %242 = arith.select %241, %238, %239 : vector<8x256xi1>, vector<8x256xf32>
    %243 = arith.truncf %233 : vector<8x64xf32> to vector<8x64xbf16>
    %cst_66 = arith.constant dense<0.000000e+00> : vector<8x256xf32>
    %244 = tpu.matmul %243, %7, %cst_66 {dimension_numbers = #tpu.dot_dimension_numbers<[1], [0], [0], [1], [0, 0, 1, 1], [], []>} : vector<8x64xbf16>, vector<64x256xbf16>, vector<8x256xf32> -> vector<8x256xf32>
    %245 = arith.addf %242, %244 : vector<8x256xf32>
    %246 = arith.negf %245 : vector<8x256xf32>
    %247 = math.exp %246 : vector<8x256xf32>
    %cst_67 = arith.constant 1.000000e+00 : f32
    %248 = vector.broadcast %cst_67 : f32 to vector<8x256xf32>
    %249 = arith.addf %248, %247 : vector<8x256xf32>
    %250 = arith.divf %248, %249 : vector<8x256xf32>
    %251 = vector.extract_strided_slice %245 {offsets = [0, 128], sizes = [8, 64], strides = [1, 1]} : vector<8x256xf32> to vector<8x64xf32>
    %252 = math.tanh %251 : vector<8x64xf32>
    %253 = vector.extract_strided_slice %250 {offsets = [0, 64], sizes = [8, 64], strides = [1, 1]} : vector<8x256xf32> to vector<8x64xf32>
    %254 = arith.mulf %253, %230 : vector<8x64xf32>
    %255 = vector.extract_strided_slice %250 {offsets = [0, 0], sizes = [8, 64], strides = [1, 1]} : vector<8x256xf32> to vector<8x64xf32>
    %256 = arith.mulf %255, %252 : vector<8x64xf32>
    %257 = arith.addf %254, %256 : vector<8x64xf32>
    %258 = vector.extract_strided_slice %250 {offsets = [0, 192], sizes = [8, 64], strides = [1, 1]} : vector<8x256xf32> to vector<8x64xf32>
    %259 = math.tanh %257 : vector<8x64xf32>
    %260 = arith.mulf %258, %259 : vector<8x64xf32>
    %cst_68 = arith.constant 0.000000e+00 : f32
    %261 = vector.broadcast %cst_68 : f32 to vector<8x64xf32>
    %262 = arith.maximumf %260, %261 : vector<8x64xf32>
    %263 = arith.maximumf %237, %262 : vector<8x64xf32>
    %c72 = arith.constant 72 : index
    %c0_69 = arith.constant 0 : index
    %264 = vector.load %arg9[%c72, %c0_69] : memref<128x256xf32, #tpu.memory_space<vmem>>, vector<8x256xf32>
    %c112 = arith.constant 112 : index
    %c0_70 = arith.constant 0 : index
    %265 = vector.load %arg9[%c112, %c0_70] : memref<128x256xf32, #tpu.memory_space<vmem>>, vector<8x256xf32>
    %266 = vector.shape_cast %26 : vector<1x256xi1> to vector<1x256xi1>
    %267 = vector.broadcast %266 : vector<1x256xi1> to vector<8x256xi1>
    %268 = arith.select %267, %264, %265 : vector<8x256xi1>, vector<8x256xf32>
    %269 = arith.truncf %260 : vector<8x64xf32> to vector<8x64xbf16>
    %cst_71 = arith.constant dense<0.000000e+00> : vector<8x256xf32>
    %270 = tpu.matmul %269, %7, %cst_71 {dimension_numbers = #tpu.dot_dimension_numbers<[1], [0], [0], [1], [0, 0, 1, 1], [], []>} : vector<8x64xbf16>, vector<64x256xbf16>, vector<8x256xf32> -> vector<8x256xf32>
    %271 = arith.addf %268, %270 : vector<8x256xf32>
    %272 = arith.negf %271 : vector<8x256xf32>
    %273 = math.exp %272 : vector<8x256xf32>
    %cst_72 = arith.constant 1.000000e+00 : f32
    %274 = vector.broadcast %cst_72 : f32 to vector<8x256xf32>
    %275 = arith.addf %274, %273 : vector<8x256xf32>
    %276 = arith.divf %274, %275 : vector<8x256xf32>
    %277 = vector.extract_strided_slice %271 {offsets = [0, 128], sizes = [8, 64], strides = [1, 1]} : vector<8x256xf32> to vector<8x64xf32>
    %278 = math.tanh %277 : vector<8x64xf32>
    %279 = vector.extract_strided_slice %276 {offsets = [0, 64], sizes = [8, 64], strides = [1, 1]} : vector<8x256xf32> to vector<8x64xf32>
    %280 = arith.mulf %279, %257 : vector<8x64xf32>
    %281 = vector.extract_strided_slice %276 {offsets = [0, 0], sizes = [8, 64], strides = [1, 1]} : vector<8x256xf32> to vector<8x64xf32>
    %282 = arith.mulf %281, %278 : vector<8x64xf32>
    %283 = arith.addf %280, %282 : vector<8x64xf32>
    %284 = vector.extract_strided_slice %276 {offsets = [0, 192], sizes = [8, 64], strides = [1, 1]} : vector<8x256xf32> to vector<8x64xf32>
    %285 = math.tanh %283 : vector<8x64xf32>
    %286 = arith.mulf %284, %285 : vector<8x64xf32>
    %cst_73 = arith.constant 0.000000e+00 : f32
    %287 = vector.broadcast %cst_73 : f32 to vector<8x64xf32>
    %288 = arith.maximumf %286, %287 : vector<8x64xf32>
    %289 = arith.maximumf %263, %288 : vector<8x64xf32>
    %c80 = arith.constant 80 : index
    %c0_74 = arith.constant 0 : index
    %290 = vector.load %arg9[%c80, %c0_74] : memref<128x256xf32, #tpu.memory_space<vmem>>, vector<8x256xf32>
    %c104 = arith.constant 104 : index
    %c0_75 = arith.constant 0 : index
    %291 = vector.load %arg9[%c104, %c0_75] : memref<128x256xf32, #tpu.memory_space<vmem>>, vector<8x256xf32>
    %292 = vector.shape_cast %26 : vector<1x256xi1> to vector<1x256xi1>
    %293 = vector.broadcast %292 : vector<1x256xi1> to vector<8x256xi1>
    %294 = arith.select %293, %290, %291 : vector<8x256xi1>, vector<8x256xf32>
    %295 = arith.truncf %286 : vector<8x64xf32> to vector<8x64xbf16>
    %cst_76 = arith.constant dense<0.000000e+00> : vector<8x256xf32>
    %296 = tpu.matmul %295, %7, %cst_76 {dimension_numbers = #tpu.dot_dimension_numbers<[1], [0], [0], [1], [0, 0, 1, 1], [], []>} : vector<8x64xbf16>, vector<64x256xbf16>, vector<8x256xf32> -> vector<8x256xf32>
    %297 = arith.addf %294, %296 : vector<8x256xf32>
    %298 = arith.negf %297 : vector<8x256xf32>
    %299 = math.exp %298 : vector<8x256xf32>
    %cst_77 = arith.constant 1.000000e+00 : f32
    %300 = vector.broadcast %cst_77 : f32 to vector<8x256xf32>
    %301 = arith.addf %300, %299 : vector<8x256xf32>
    %302 = arith.divf %300, %301 : vector<8x256xf32>
    %303 = vector.extract_strided_slice %297 {offsets = [0, 128], sizes = [8, 64], strides = [1, 1]} : vector<8x256xf32> to vector<8x64xf32>
    %304 = math.tanh %303 : vector<8x64xf32>
    %305 = vector.extract_strided_slice %302 {offsets = [0, 64], sizes = [8, 64], strides = [1, 1]} : vector<8x256xf32> to vector<8x64xf32>
    %306 = arith.mulf %305, %283 : vector<8x64xf32>
    %307 = vector.extract_strided_slice %302 {offsets = [0, 0], sizes = [8, 64], strides = [1, 1]} : vector<8x256xf32> to vector<8x64xf32>
    %308 = arith.mulf %307, %304 : vector<8x64xf32>
    %309 = arith.addf %306, %308 : vector<8x64xf32>
    %310 = vector.extract_strided_slice %302 {offsets = [0, 192], sizes = [8, 64], strides = [1, 1]} : vector<8x256xf32> to vector<8x64xf32>
    %311 = math.tanh %309 : vector<8x64xf32>
    %312 = arith.mulf %310, %311 : vector<8x64xf32>
    %cst_78 = arith.constant 0.000000e+00 : f32
    %313 = vector.broadcast %cst_78 : f32 to vector<8x64xf32>
    %314 = arith.maximumf %312, %313 : vector<8x64xf32>
    %315 = arith.maximumf %289, %314 : vector<8x64xf32>
    %c88 = arith.constant 88 : index
    %c0_79 = arith.constant 0 : index
    %316 = vector.load %arg9[%c88, %c0_79] : memref<128x256xf32, #tpu.memory_space<vmem>>, vector<8x256xf32>
    %c96 = arith.constant 96 : index
    %c0_80 = arith.constant 0 : index
    %317 = vector.load %arg9[%c96, %c0_80] : memref<128x256xf32, #tpu.memory_space<vmem>>, vector<8x256xf32>
    %318 = vector.shape_cast %26 : vector<1x256xi1> to vector<1x256xi1>
    %319 = vector.broadcast %318 : vector<1x256xi1> to vector<8x256xi1>
    %320 = arith.select %319, %316, %317 : vector<8x256xi1>, vector<8x256xf32>
    %321 = arith.truncf %312 : vector<8x64xf32> to vector<8x64xbf16>
    %cst_81 = arith.constant dense<0.000000e+00> : vector<8x256xf32>
    %322 = tpu.matmul %321, %7, %cst_81 {dimension_numbers = #tpu.dot_dimension_numbers<[1], [0], [0], [1], [0, 0, 1, 1], [], []>} : vector<8x64xbf16>, vector<64x256xbf16>, vector<8x256xf32> -> vector<8x256xf32>
    %323 = arith.addf %320, %322 : vector<8x256xf32>
    %324 = arith.negf %323 : vector<8x256xf32>
    %325 = math.exp %324 : vector<8x256xf32>
    %cst_82 = arith.constant 1.000000e+00 : f32
    %326 = vector.broadcast %cst_82 : f32 to vector<8x256xf32>
    %327 = arith.addf %326, %325 : vector<8x256xf32>
    %328 = arith.divf %326, %327 : vector<8x256xf32>
    %329 = vector.extract_strided_slice %323 {offsets = [0, 128], sizes = [8, 64], strides = [1, 1]} : vector<8x256xf32> to vector<8x64xf32>
    %330 = math.tanh %329 : vector<8x64xf32>
    %331 = vector.extract_strided_slice %328 {offsets = [0, 64], sizes = [8, 64], strides = [1, 1]} : vector<8x256xf32> to vector<8x64xf32>
    %332 = arith.mulf %331, %309 : vector<8x64xf32>
    %333 = vector.extract_strided_slice %328 {offsets = [0, 0], sizes = [8, 64], strides = [1, 1]} : vector<8x256xf32> to vector<8x64xf32>
    %334 = arith.mulf %333, %330 : vector<8x64xf32>
    %335 = arith.addf %332, %334 : vector<8x64xf32>
    %336 = vector.extract_strided_slice %328 {offsets = [0, 192], sizes = [8, 64], strides = [1, 1]} : vector<8x256xf32> to vector<8x64xf32>
    %337 = math.tanh %335 : vector<8x64xf32>
    %338 = arith.mulf %336, %337 : vector<8x64xf32>
    %cst_83 = arith.constant 0.000000e+00 : f32
    %339 = vector.broadcast %cst_83 : f32 to vector<8x64xf32>
    %340 = arith.maximumf %338, %339 : vector<8x64xf32>
    %341 = arith.maximumf %315, %340 : vector<8x64xf32>
    %c96_84 = arith.constant 96 : index
    %c0_85 = arith.constant 0 : index
    %342 = vector.load %arg9[%c96_84, %c0_85] : memref<128x256xf32, #tpu.memory_space<vmem>>, vector<8x256xf32>
    %c88_86 = arith.constant 88 : index
    %c0_87 = arith.constant 0 : index
    %343 = vector.load %arg9[%c88_86, %c0_87] : memref<128x256xf32, #tpu.memory_space<vmem>>, vector<8x256xf32>
    %344 = vector.shape_cast %26 : vector<1x256xi1> to vector<1x256xi1>
    %345 = vector.broadcast %344 : vector<1x256xi1> to vector<8x256xi1>
    %346 = arith.select %345, %342, %343 : vector<8x256xi1>, vector<8x256xf32>
    %347 = arith.truncf %338 : vector<8x64xf32> to vector<8x64xbf16>
    %cst_88 = arith.constant dense<0.000000e+00> : vector<8x256xf32>
    %348 = tpu.matmul %347, %7, %cst_88 {dimension_numbers = #tpu.dot_dimension_numbers<[1], [0], [0], [1], [0, 0, 1, 1], [], []>} : vector<8x64xbf16>, vector<64x256xbf16>, vector<8x256xf32> -> vector<8x256xf32>
    %349 = arith.addf %346, %348 : vector<8x256xf32>
    %350 = arith.negf %349 : vector<8x256xf32>
    %351 = math.exp %350 : vector<8x256xf32>
    %cst_89 = arith.constant 1.000000e+00 : f32
    %352 = vector.broadcast %cst_89 : f32 to vector<8x256xf32>
    %353 = arith.addf %352, %351 : vector<8x256xf32>
    %354 = arith.divf %352, %353 : vector<8x256xf32>
    %355 = vector.extract_strided_slice %349 {offsets = [0, 128], sizes = [8, 64], strides = [1, 1]} : vector<8x256xf32> to vector<8x64xf32>
    %356 = math.tanh %355 : vector<8x64xf32>
    %357 = vector.extract_strided_slice %354 {offsets = [0, 64], sizes = [8, 64], strides = [1, 1]} : vector<8x256xf32> to vector<8x64xf32>
    %358 = arith.mulf %357, %335 : vector<8x64xf32>
    %359 = vector.extract_strided_slice %354 {offsets = [0, 0], sizes = [8, 64], strides = [1, 1]} : vector<8x256xf32> to vector<8x64xf32>
    %360 = arith.mulf %359, %356 : vector<8x64xf32>
    %361 = arith.addf %358, %360 : vector<8x64xf32>
    %362 = vector.extract_strided_slice %354 {offsets = [0, 192], sizes = [8, 64], strides = [1, 1]} : vector<8x256xf32> to vector<8x64xf32>
    %363 = math.tanh %361 : vector<8x64xf32>
    %364 = arith.mulf %362, %363 : vector<8x64xf32>
    %cst_90 = arith.constant 0.000000e+00 : f32
    %365 = vector.broadcast %cst_90 : f32 to vector<8x64xf32>
    %366 = arith.maximumf %364, %365 : vector<8x64xf32>
    %367 = arith.maximumf %341, %366 : vector<8x64xf32>
    %c104_91 = arith.constant 104 : index
    %c0_92 = arith.constant 0 : index
    %368 = vector.load %arg9[%c104_91, %c0_92] : memref<128x256xf32, #tpu.memory_space<vmem>>, vector<8x256xf32>
    %c80_93 = arith.constant 80 : index
    %c0_94 = arith.constant 0 : index
    %369 = vector.load %arg9[%c80_93, %c0_94] : memref<128x256xf32, #tpu.memory_space<vmem>>, vector<8x256xf32>
    %370 = vector.shape_cast %26 : vector<1x256xi1> to vector<1x256xi1>
    %371 = vector.broadcast %370 : vector<1x256xi1> to vector<8x256xi1>
    %372 = arith.select %371, %368, %369 : vector<8x256xi1>, vector<8x256xf32>
    %373 = arith.truncf %364 : vector<8x64xf32> to vector<8x64xbf16>
    %cst_95 = arith.constant dense<0.000000e+00> : vector<8x256xf32>
    %374 = tpu.matmul %373, %7, %cst_95 {dimension_numbers = #tpu.dot_dimension_numbers<[1], [0], [0], [1], [0, 0, 1, 1], [], []>} : vector<8x64xbf16>, vector<64x256xbf16>, vector<8x256xf32> -> vector<8x256xf32>
    %375 = arith.addf %372, %374 : vector<8x256xf32>
    %376 = arith.negf %375 : vector<8x256xf32>
    %377 = math.exp %376 : vector<8x256xf32>
    %cst_96 = arith.constant 1.000000e+00 : f32
    %378 = vector.broadcast %cst_96 : f32 to vector<8x256xf32>
    %379 = arith.addf %378, %377 : vector<8x256xf32>
    %380 = arith.divf %378, %379 : vector<8x256xf32>
    %381 = vector.extract_strided_slice %375 {offsets = [0, 128], sizes = [8, 64], strides = [1, 1]} : vector<8x256xf32> to vector<8x64xf32>
    %382 = math.tanh %381 : vector<8x64xf32>
    %383 = vector.extract_strided_slice %380 {offsets = [0, 64], sizes = [8, 64], strides = [1, 1]} : vector<8x256xf32> to vector<8x64xf32>
    %384 = arith.mulf %383, %361 : vector<8x64xf32>
    %385 = vector.extract_strided_slice %380 {offsets = [0, 0], sizes = [8, 64], strides = [1, 1]} : vector<8x256xf32> to vector<8x64xf32>
    %386 = arith.mulf %385, %382 : vector<8x64xf32>
    %387 = arith.addf %384, %386 : vector<8x64xf32>
    %388 = vector.extract_strided_slice %380 {offsets = [0, 192], sizes = [8, 64], strides = [1, 1]} : vector<8x256xf32> to vector<8x64xf32>
    %389 = math.tanh %387 : vector<8x64xf32>
    %390 = arith.mulf %388, %389 : vector<8x64xf32>
    %cst_97 = arith.constant 0.000000e+00 : f32
    %391 = vector.broadcast %cst_97 : f32 to vector<8x64xf32>
    %392 = arith.maximumf %390, %391 : vector<8x64xf32>
    %393 = arith.maximumf %367, %392 : vector<8x64xf32>
    %c112_98 = arith.constant 112 : index
    %c0_99 = arith.constant 0 : index
    %394 = vector.load %arg9[%c112_98, %c0_99] : memref<128x256xf32, #tpu.memory_space<vmem>>, vector<8x256xf32>
    %c72_100 = arith.constant 72 : index
    %c0_101 = arith.constant 0 : index
    %395 = vector.load %arg9[%c72_100, %c0_101] : memref<128x256xf32, #tpu.memory_space<vmem>>, vector<8x256xf32>
    %396 = vector.shape_cast %26 : vector<1x256xi1> to vector<1x256xi1>
    %397 = vector.broadcast %396 : vector<1x256xi1> to vector<8x256xi1>
    %398 = arith.select %397, %394, %395 : vector<8x256xi1>, vector<8x256xf32>
    %399 = arith.truncf %390 : vector<8x64xf32> to vector<8x64xbf16>
    %cst_102 = arith.constant dense<0.000000e+00> : vector<8x256xf32>
    %400 = tpu.matmul %399, %7, %cst_102 {dimension_numbers = #tpu.dot_dimension_numbers<[1], [0], [0], [1], [0, 0, 1, 1], [], []>} : vector<8x64xbf16>, vector<64x256xbf16>, vector<8x256xf32> -> vector<8x256xf32>
    %401 = arith.addf %398, %400 : vector<8x256xf32>
    %402 = arith.negf %401 : vector<8x256xf32>
    %403 = math.exp %402 : vector<8x256xf32>
    %cst_103 = arith.constant 1.000000e+00 : f32
    %404 = vector.broadcast %cst_103 : f32 to vector<8x256xf32>
    %405 = arith.addf %404, %403 : vector<8x256xf32>
    %406 = arith.divf %404, %405 : vector<8x256xf32>
    %407 = vector.extract_strided_slice %401 {offsets = [0, 128], sizes = [8, 64], strides = [1, 1]} : vector<8x256xf32> to vector<8x64xf32>
    %408 = math.tanh %407 : vector<8x64xf32>
    %409 = vector.extract_strided_slice %406 {offsets = [0, 64], sizes = [8, 64], strides = [1, 1]} : vector<8x256xf32> to vector<8x64xf32>
    %410 = arith.mulf %409, %387 : vector<8x64xf32>
    %411 = vector.extract_strided_slice %406 {offsets = [0, 0], sizes = [8, 64], strides = [1, 1]} : vector<8x256xf32> to vector<8x64xf32>
    %412 = arith.mulf %411, %408 : vector<8x64xf32>
    %413 = arith.addf %410, %412 : vector<8x64xf32>
    %414 = vector.extract_strided_slice %406 {offsets = [0, 192], sizes = [8, 64], strides = [1, 1]} : vector<8x256xf32> to vector<8x64xf32>
    %415 = math.tanh %413 : vector<8x64xf32>
    %416 = arith.mulf %414, %415 : vector<8x64xf32>
    %cst_104 = arith.constant 0.000000e+00 : f32
    %417 = vector.broadcast %cst_104 : f32 to vector<8x64xf32>
    %418 = arith.maximumf %416, %417 : vector<8x64xf32>
    %419 = arith.maximumf %393, %418 : vector<8x64xf32>
    %c120_105 = arith.constant 120 : index
    %c0_106 = arith.constant 0 : index
    %420 = vector.load %arg9[%c120_105, %c0_106] : memref<128x256xf32, #tpu.memory_space<vmem>>, vector<8x256xf32>
    %c64_107 = arith.constant 64 : index
    %c0_108 = arith.constant 0 : index
    %421 = vector.load %arg9[%c64_107, %c0_108] : memref<128x256xf32, #tpu.memory_space<vmem>>, vector<8x256xf32>
    %422 = vector.shape_cast %26 : vector<1x256xi1> to vector<1x256xi1>
    %423 = vector.broadcast %422 : vector<1x256xi1> to vector<8x256xi1>
    %424 = arith.select %423, %420, %421 : vector<8x256xi1>, vector<8x256xf32>
    %425 = arith.truncf %416 : vector<8x64xf32> to vector<8x64xbf16>
    %cst_109 = arith.constant dense<0.000000e+00> : vector<8x256xf32>
    %426 = tpu.matmul %425, %7, %cst_109 {dimension_numbers = #tpu.dot_dimension_numbers<[1], [0], [0], [1], [0, 0, 1, 1], [], []>} : vector<8x64xbf16>, vector<64x256xbf16>, vector<8x256xf32> -> vector<8x256xf32>
    %427 = arith.addf %424, %426 : vector<8x256xf32>
    %428 = arith.negf %427 : vector<8x256xf32>
    %429 = math.exp %428 : vector<8x256xf32>
    %cst_110 = arith.constant 1.000000e+00 : f32
    %430 = vector.broadcast %cst_110 : f32 to vector<8x256xf32>
    %431 = arith.addf %430, %429 : vector<8x256xf32>
    %432 = arith.divf %430, %431 : vector<8x256xf32>
    %433 = vector.extract_strided_slice %427 {offsets = [0, 128], sizes = [8, 64], strides = [1, 1]} : vector<8x256xf32> to vector<8x64xf32>
    %434 = math.tanh %433 : vector<8x64xf32>
    %435 = vector.extract_strided_slice %432 {offsets = [0, 64], sizes = [8, 64], strides = [1, 1]} : vector<8x256xf32> to vector<8x64xf32>
    %436 = arith.mulf %435, %413 : vector<8x64xf32>
    %437 = vector.extract_strided_slice %432 {offsets = [0, 0], sizes = [8, 64], strides = [1, 1]} : vector<8x256xf32> to vector<8x64xf32>
    %438 = arith.mulf %437, %434 : vector<8x64xf32>
    %439 = arith.addf %436, %438 : vector<8x64xf32>
    %440 = vector.extract_strided_slice %432 {offsets = [0, 192], sizes = [8, 64], strides = [1, 1]} : vector<8x256xf32> to vector<8x64xf32>
    %441 = math.tanh %439 : vector<8x64xf32>
    %442 = arith.mulf %440, %441 : vector<8x64xf32>
    %cst_111 = arith.constant 0.000000e+00 : f32
    %443 = vector.broadcast %cst_111 : f32 to vector<8x64xf32>
    %444 = arith.maximumf %442, %443 : vector<8x64xf32>
    %445 = arith.maximumf %419, %444 : vector<8x64xf32>
    %446 = tpu.concatenate %236, %445 in 1 : vector<8x64xf32>, vector<8x64xf32> -> vector<8x128xf32>
    %447 = arith.truncf %446 : vector<8x128xf32> to vector<8x128xbf16>
    %c0_112 = arith.constant 0 : index
    %c0_113 = arith.constant 0 : index
    %448 = vector.load %arg4[%c0_112, %c0_113] : memref<128x64xbf16, #tpu.memory_space<vmem>>, vector<128x64xbf16>
    %cst_114 = arith.constant dense<0.000000e+00> : vector<8x64xf32>
    %449 = tpu.matmul %447, %448, %cst_114 {dimension_numbers = #tpu.dot_dimension_numbers<[1], [0], [0], [1], [0, 0, 1, 1], [], []>} : vector<8x128xbf16>, vector<128x64xbf16>, vector<8x64xf32> -> vector<8x64xf32>
    %c0_115 = arith.constant 0 : index
    %c0_116 = arith.constant 0 : index
    %450 = vector.load %arg5[%c0_115, %c0_116] : memref<1x64xf32, #tpu.memory_space<vmem>>, vector<1x64xf32>
    %451 = vector.broadcast %450 : vector<1x64xf32> to vector<8x64xf32>
    %452 = arith.addf %449, %451 : vector<8x64xf32>
    %cst_117 = arith.constant 0.000000e+00 : f32
    %453 = vector.broadcast %cst_117 : f32 to vector<8x64xf32>
    %454 = arith.maximumf %452, %453 : vector<8x64xf32>
    %455 = arith.truncf %454 : vector<8x64xf32> to vector<8x64xbf16>
    %c0_118 = arith.constant 0 : index
    %c0_119 = arith.constant 0 : index
    %456 = vector.load %arg6[%c0_118, %c0_119] : memref<64x8xbf16, #tpu.memory_space<vmem>>, vector<64x8xbf16>
    %cst_120 = arith.constant dense<0.000000e+00> : vector<8x8xf32>
    %457 = tpu.matmul %455, %456, %cst_120 {dimension_numbers = #tpu.dot_dimension_numbers<[1], [0], [0], [1], [0, 0, 1, 1], [], []>} : vector<8x64xbf16>, vector<64x8xbf16>, vector<8x8xf32> -> vector<8x8xf32>
    %c0_121 = arith.constant 0 : index
    %c0_122 = arith.constant 0 : index
    %458 = vector.load %arg7[%c0_121, %c0_122] : memref<1x8xf32, #tpu.memory_space<vmem>>, vector<1x8xf32>
    %459 = vector.broadcast %458 : vector<1x8xf32> to vector<8x8xf32>
    %460 = arith.addf %457, %459 : vector<8x8xf32>
    %cst_123 = arith.constant dense<0xFF800000> : vector<8xf32>
    %461 = vector.multi_reduction <maximumf>, %460, %cst_123 [1] : vector<8x8xf32> to vector<8xf32>
    %462 = vector.shape_cast %461 : vector<8xf32> to vector<8x1xf32>
    %463 = vector.broadcast %462 : vector<8x1xf32> to vector<8x8xf32>
    %464 = arith.subf %460, %463 : vector<8x8xf32>
    %465 = math.exp %464 : vector<8x8xf32>
    %cst_124 = arith.constant dense<0.000000e+00> : vector<8xf32>
    %466 = vector.multi_reduction <add>, %465, %cst_124 [1] : vector<8x8xf32> to vector<8xf32>
    %467 = vector.shape_cast %466 : vector<8xf32> to vector<8x1xf32>
    %468 = math.log %467 : vector<8x1xf32>
    %469 = vector.broadcast %468 : vector<8x1xf32> to vector<8x8xf32>
    %470 = arith.subf %464, %469 : vector<8x8xf32>
    %471 = vector.extract_strided_slice %470 {offsets = [0, 0], sizes = [2, 8], strides = [1, 1]} : vector<8x8xf32> to vector<2x8xf32>
    %c0_125 = arith.constant 0 : index
    %c0_126 = arith.constant 0 : index
    %472 = vector.load %arg8[%c0_125, %c0_126] : memref<2x8xf32, #tpu.memory_space<vmem>>, vector<2x8xf32>
    tpu.vector_store %arg8[%c0_125, %c0_126], %471 {strides = array<i32>} : memref<2x8xf32, #tpu.memory_space<vmem>>, vector<2x8xf32>,
    return
  }
}

</mosaic_0001>

<llo_original>
// kernel: tpu_custom_call.1
$region0: #{tpu_custom_call.1}
  #allocation0 [shape = 'u32[]', space=smem, size = 0x4, offset = 0x4, fixed_abs, tag = 'smem constant byte address 0x4 - core index']
  #allocation1 [shape = 'u32[144,128]{1,0:T(1,128)}', space=vmem, size = 0x12000, scoped, tag = 'internal scratch']
  #allocation2 [shape = 'f32[128,256]{1,0:T(8,128)}', space=vmem, size = 0x20000, scoped, tag = 'scratch operand']
  %s0 = inlined_call_operand.hbm [shape: bf16[128,128], index: 0, kind: input, shape index: {}]
  %s1 = inlined_call_operand.vmem [shape: bf16[128,256], index: 1, kind: input, shape index: {}]
  %s2 = inlined_call_operand.hbm [shape: bf16[64,256], index: 2, kind: input, shape index: {}]
  %s3 = inlined_call_operand.vmem [shape: f32[1,256], index: 3, kind: input, shape index: {}]
  %s4 = inlined_call_operand.vmem [shape: bf16[128,64], index: 4, kind: input, shape index: {}]
  %s5 = inlined_call_operand.vmem [shape: f32[1,64], index: 5, kind: input, shape index: {}]
  %s6 = inlined_call_operand.vmem [shape: bf16[64,8], index: 6, kind: input, shape index: {}]
  %s7 = inlined_call_operand.vmem [shape: f32[1,8], index: 7, kind: input, shape index: {}]
  %s8 = inlined_call_operand.hbm [shape: f32[2,8], index: 8, kind: output, shape index: {}]
  %s9 = sld [smem:[#allocation0]]
  $region50: #{tpu_custom_call.1} parent=0
    _
  %s11 = ssub.s32 1, %s9
  %s12 = scalar_select 0, %s11, %s9
  $region1: #{tpu_custom_call.1} parent=0
    #allocation3 [shape = 'u8[32768]{0}', space=vmem, size = 0x8000, scoped, tag = 'input window, operand 0, single buffered']
    #allocation4 [shape = 's32[1]{0}', space=sflag, size = 0x4, scoped, tag = 'scoped memory for tpu_custom_call.1']
    #allocation5 [shape = 's32[1]{0}', space=sflag, size = 0x4, scoped, tag = 'scoped memory for tpu_custom_call.1']
    #allocation6 [shape = 'u8[32768]{0}', space=vmem, size = 0x8000, scoped, tag = 'input window, operand 2, single buffered']
    #allocation7 [shape = 's32[1]{0}', space=sflag, size = 0x4, scoped, tag = 'scoped memory for tpu_custom_call.1']
    #allocation8 [shape = 'u8[1024]{0}', space=vmem, size = 0x400, scoped, tag = 'output window, operand 0, single buffered']
    %13 = vsyncpa [#allocation4], 0
    %14 = vsyncpa [#allocation7], 0
    %15 = vsyncpa [#allocation5], 0
    // Predicated region
    $region2: #{tpu_custom_call.1} parent=1 // pred_check
      _
    $region3: #{tpu_custom_call.1} parent=1 // pred_check_branch
      %17 = sbr.rel (0) target = $region5
    $region4: #{tpu_custom_call.1} parent=1 // pred_region
      %s19 = ssub.s32 1024, 1024
      %20 = vsyncadd [#allocation4], %s19
      %s21 = sshll.u32 [#allocation3], 4
      %s22 = int_to_ptr.vmem [resolvable:$true] %s21
      %27 = dma.hbm_to_vmem [thread:$0]  %s0, 1024, %s22, [#allocation4], 64, 64, 4
    $region5: #{tpu_custom_call.1} parent=1 // pred_fallthru
      _
    // Predicated region
    $region6: #{tpu_custom_call.1} parent=1 // pred_check
      _
    $region7: #{tpu_custom_call.1} parent=1 // pred_check_branch
      %29 = sbr.rel (0) target = $region9
    $region8: #{tpu_custom_call.1} parent=1 // pred_region
      _
    $region9: #{tpu_custom_call.1} parent=1 // pred_fallthru
      _
    // Predicated region
    $region10: #{tpu_custom_call.1} parent=1 // pred_check
      _
    $region11: #{tpu_custom_call.1} parent=1 // pred_check_branch
      %31 = sbr.rel (0) target = $region13
    $region12: #{tpu_custom_call.1} parent=1 // pred_region
      %s33 = ssub.s32 1024, 1024
      %34 = vsyncadd [#allocation7], %s33
      %s35 = sshll.u32 [#allocation6], 4
      %s36 = int_to_ptr.vmem [resolvable:$true] %s35
      %41 = dma.hbm_to_vmem [thread:$0]  %s2, 1024, %s36, [#allocation7], 128, 128, 8
    $region13: #{tpu_custom_call.1} parent=1 // pred_fallthru
      _
    // Predicated region
    $region14: #{tpu_custom_call.1} parent=1 // pred_check
      _
    $region15: #{tpu_custom_call.1} parent=1 // pred_check_branch
      %43 = sbr.rel (0) target = $region17
    $region16: #{tpu_custom_call.1} parent=1 // pred_region
      _
    $region17: #{tpu_custom_call.1} parent=1 // pred_fallthru
      _
    // Predicated region
    $region18: #{tpu_custom_call.1} parent=1 // pred_check
      _
    $region19: #{tpu_custom_call.1} parent=1 // pred_check_branch
      %45 = sbr.rel (0) target = $region21
    $region20: #{tpu_custom_call.1} parent=1 // pred_region
      _
    $region21: #{tpu_custom_call.1} parent=1 // pred_fallthru
      _
    // Predicated region
    $region22: #{tpu_custom_call.1} parent=1 // pred_check
      _
    $region23: #{tpu_custom_call.1} parent=1 // pred_check_branch
      %47 = sbr.rel (0) target = $region25
    $region24: #{tpu_custom_call.1} parent=1 // pred_region
      _
    $region25: #{tpu_custom_call.1} parent=1 // pred_fallthru
      _
    // Predicated region
    $region26: #{tpu_custom_call.1} parent=1 // pred_check
      _
    $region27: #{tpu_custom_call.1} parent=1 // pred_check_branch
      %49 = sbr.rel (0) target = $region29
    $region28: #{tpu_custom_call.1} parent=1 // pred_region
      _
    $region29: #{tpu_custom_call.1} parent=1 // pred_fallthru
      _
    // Predicated region
    $region30: #{tpu_custom_call.1} parent=1 // pred_check
      _
    $region31: #{tpu_custom_call.1} parent=1 // pred_check_branch
      %51 = sbr.rel (0) target = $region33
    $region32: #{tpu_custom_call.1} parent=1 // pred_region
      _
    $region33: #{tpu_custom_call.1} parent=1 // pred_fallthru
      _
    // Predicated region
    $region34: #{tpu_custom_call.1} parent=1 // pred_check
      _
    $region35: #{tpu_custom_call.1} parent=1 // pred_check_branch
      %53 = sbr.rel (0) target = $region37
    $region36: #{tpu_custom_call.1} parent=1 // pred_region
      %54 = dma.done [#allocation4], 1024
    $region37: #{tpu_custom_call.1} parent=1 // pred_fallthru
      _
    // Predicated region
    $region38: #{tpu_custom_call.1} parent=1 // pred_check
      _
    $region39: #{tpu_custom_call.1} parent=1 // pred_check_branch
      %56 = sbr.rel (0) target = $region41
    $region40: #{tpu_custom_call.1} parent=1 // pred_region
      %57 = dma.done [#allocation7], 1024
    $region41: #{tpu_custom_call.1} parent=1 // pred_fallthru
      _
    %v59 = vld [vmem:[#allocation3] sm:$0xf]
    %v60 = vld [vmem:[#allocation3 + $0x4] sm:$0xf]
    %v61 = vld [vmem:[#allocation3 + $0x8] sm:$0xf]
    %v62 = vld [vmem:[#allocation3 + $0xc] sm:$0xf]
    %v63 = vld [vmem:[#allocation3 + $0x10] sm:$0xf]
    %v64 = vld [vmem:[#allocation3 + $0x14] sm:$0xf]
    %v65 = vld [vmem:[#allocation3 + $0x18] sm:$0xf]
    %v66 = vld [vmem:[#allocation3 + $0x1c] sm:$0xf]
    %v67 = vld [vmem:[#allocation3 + $0x20] sm:$0xf]
    %v68 = vld [vmem:[#allocation3 + $0x24] sm:$0xf]
    %v69 = vld [vmem:[#allocation3 + $0x28] sm:$0xf]
    %v70 = vld [vmem:[#allocation3 + $0x2c] sm:$0xf]
    %v71 = vld [vmem:[#allocation3 + $0x30] sm:$0xf]
    %v72 = vld [vmem:[#allocation3 + $0x34] sm:$0xf]
    %v73 = vld [vmem:[#allocation3 + $0x38] sm:$0xf]
    %v74 = vld [vmem:[#allocation3 + $0x3c] sm:$0xf]
    %v75 = vld [vmem:[%s1] sm:$0xff]
    %v76 = vld [vmem:[%s1 + $0x8] sm:$0xff]
    %v77 = vld [vmem:[%s1 + $0x10] sm:$0xff]
    %v78 = vld [vmem:[%s1 + $0x18] sm:$0xff]
    %v79 = vld [vmem:[%s1 + $0x20] sm:$0xff]
    %v80 = vld [vmem:[%s1 + $0x28] sm:$0xff]
    %v81 = vld [vmem:[%s1 + $0x30] sm:$0xff]
    %v82 = vld [vmem:[%s1 + $0x38] sm:$0xff]
    %v83 = vld [vmem:[%s1 + $0x40] sm:$0xff]
    %v84 = vld [vmem:[%s1 + $0x48] sm:$0xff]
    %v85 = vld [vmem:[%s1 + $0x50] sm:$0xff]
    %v86 = vld [vmem:[%s1 + $0x58] sm:$0xff]
    %v87 = vld [vmem:[%s1 + $0x60] sm:$0xff]
    %v88 = vld [vmem:[%s1 + $0x68] sm:$0xff]
    %v89 = vld [vmem:[%s1 + $0x70] sm:$0xff]
    %v90 = vld [vmem:[%s1 + $0x78] sm:$0xff]
    %v91 = vld [vmem:[%s3] sm:$0x3]
    %v93 = vlaneseq
    %v94 = vshrl.u32 %v93, 7
    %v95 = vsub.s32 0, %v94
    %v96 = vrot.slane %v91, %v95
    %v97 = vlaneseq
    %v98 = vshrl.u32 %v97, 7
    %v99 = vsub.s32 1, %v98
    %v100 = vrot.slane %v91, %v99
    %v119 = vunpack.c.l.b16 %v59
    %v120 = vunpack.c.l.b16 %v60
    %v121 = vunpack.c.l.b16 %v61
    %v122 = vunpack.c.l.b16 %v62
    %v123 = vunpack.c.l.b16 %v63
    %v124 = vunpack.c.l.b16 %v64
    %v125 = vunpack.c.l.b16 %v65
    %v126 = vunpack.c.l.b16 %v66
    %v127 = vunpack.c.l.b16 %v67
    %v128 = vunpack.c.l.b16 %v68
    %v129 = vunpack.c.l.b16 %v69
    %v130 = vunpack.c.l.b16 %v70
    %v131 = vunpack.c.l.b16 %v71
    %v132 = vunpack.c.l.b16 %v72
    %v133 = vunpack.c.l.b16 %v73
    %v134 = vunpack.c.l.b16 %v74
    %v135 = vpack.c.b16 %v120, %v119
    %v136 = vpack.c.b16 %v122, %v121
    %v137 = vpack.c.b16 %v124, %v123
    %v138 = vpack.c.b16 %v126, %v125
    %v139 = vpack.c.b16 %v128, %v127
    %v140 = vpack.c.b16 %v130, %v129
    %v141 = vpack.c.b16 %v132, %v131
    %v142 = vpack.c.b16 %v134, %v133
    %v167 = vunpack.c.l.b16 %v75
    %v168 = vunpack.c.h.b16 %v75
    %v169 = vunpack.c.l.b16 %v76
    %v170 = vunpack.c.h.b16 %v76
    %v171 = vunpack.c.l.b16 %v77
    %v172 = vunpack.c.h.b16 %v77
    %v173 = vunpack.c.l.b16 %v78
    %v174 = vunpack.c.h.b16 %v78
    %v175 = vunpack.c.l.b16 %v79
    %v176 = vunpack.c.h.b16 %v79
    %v177 = vunpack.c.l.b16 %v80
    %v178 = vunpack.c.h.b16 %v80
    %v179 = vunpack.c.l.b16 %v81
    %v180 = vunpack.c.h.b16 %v81
    %v181 = vunpack.c.l.b16 %v82
    %v182 = vunpack.c.h.b16 %v82
    %v183 = vunpack.c.l.b16 %v83
    %v184 = vunpack.c.h.b16 %v83
    %v185 = vunpack.c.l.b16 %v84
    %v186 = vunpack.c.h.b16 %v84
    %v187 = vunpack.c.l.b16 %v85
    %v188 = vunpack.c.h.b16 %v85
    %v189 = vunpack.c.l.b16 %v86
    %v190 = vunpack.c.h.b16 %v86
    %v191 = vunpack.c.l.b16 %v87
    %v192 = vunpack.c.h.b16 %v87
    %v193 = vunpack.c.l.b16 %v88
    %v194 = vunpack.c.h.b16 %v88
    %v195 = vunpack.c.l.b16 %v89
    %v196 = vunpack.c.h.b16 %v89
    %v197 = vunpack.c.l.b16 %v90
    %v198 = vunpack.c.h.b16 %v90
    %v199 = vpack.c.b16 %v169, %v167
    %v200 = vpack.c.b16 %v170, %v168
    %v201 = vpack.c.b16 %v173, %v171
    %v202 = vpack.c.b16 %v174, %v172
    %v203 = vpack.c.b16 %v177, %v175
    %v204 = vpack.c.b16 %v178, %v176
    %v205 = vpack.c.b16 %v181, %v179
    %v206 = vpack.c.b16 %v182, %v180
    %v207 = vpack.c.b16 %v185, %v183
    %v208 = vpack.c.b16 %v186, %v184
    %v209 = vpack.c.b16 %v189, %v187
    %v210 = vpack.c.b16 %v190, %v188
    %v211 = vpack.c.b16 %v193, %v191
    %v212 = vpack.c.b16 %v194, %v192
    %v213 = vpack.c.b16 %v197, %v195
    %v214 = vpack.c.b16 %v198, %v196
    %231 = vmatprep.subr.bf16.mxu0 %v200
    %232 = vmatpush1.bf16.msra.mxu0 %v199
    %233 = vmatprep.subr.bf16.mxu0 %v202
    %234 = vmatpush1.bf16.msra.mxu0 %v201
    %235 = vmatprep.subr.bf16.mxu0 %v204
    %236 = vmatpush1.bf16.msra.mxu0 %v203
    %237 = vmatprep.subr.bf16.mxu0 %v206
    %238 = vmatpush1.bf16.msra.mxu0 %v205
    %239 = vmatprep.subr.bf16.mxu0 %v208
    %240 = vmatpush1.bf16.msra.mxu0 %v207
    %241 = vmatprep.subr.bf16.mxu0 %v210
    %242 = vmatpush1.bf16.msra.mxu0 %v209
    %243 = vmatprep.subr.bf16.mxu0 %v212
    %244 = vmatpush1.bf16.msra.mxu0 %v211
    %245 = vmatprep.subr.bf16.mxu0 %v214
    %246 = vmatpush1.bf16.msra.mxu0 %v213
    %247 = vmatprep.subr.bf16.mxu0 0
    %248 = vmatpush1.bf16.msra.mxu0 0
    %249 = vmatprep.subr.bf16.mxu0 0
    %250 = vmatpush1.bf16.msra.mxu0 0
    %251 = vmatprep.subr.bf16.mxu0 0
    %252 = vmatpush1.bf16.msra.mxu0 0
    %253 = vmatprep.subr.bf16.mxu0 0
    %254 = vmatpush1.bf16.msra.mxu0 0
    %255 = vmatprep.subr.bf16.mxu0 0
    %256 = vmatpush1.bf16.msra.mxu0 0
    %257 = vmatprep.subr.bf16.mxu0 0
    %258 = vmatpush1.bf16.msra.mxu0 0
    %259 = vmatprep.subr.bf16.mxu0 0
    %260 = vmatpush1.bf16.msra.mxu0 0
    %261 = vmatprep.subr.bf16.mxu0 0
    %262 = vmatpush1.bf16.msra.mxu0 0
    %263 = vmatprep.mubr.bf16.mxu0 0
    %264 = vmatmul.mubr.bf16.gmra.mrb[0].mxu0 %v135
    %v265 = vpop.f32.mrb[0].mxu0
    %v266 = vadd.f32 %v96, %v265
    %v267 = vpop.f32.mrb[0].mxu0
    %v268 = vadd.f32 %v100, %v267
    %v269 = vpop.f32.mrb[0].mxu0
    %v270 = vadd.f32 %v96, %v269
    %v271 = vpop.f32.mrb[0].mxu0
    %v272 = vadd.f32 %v100, %v271
    %273 = vmatprep.mubr.bf16.mxu0 0
    %274 = vmatmul.mubr.bf16.gmra.mrb[0].mxu0 %v136
    %v275 = vpop.f32.mrb[0].mxu0
    %v276 = vadd.f32 %v96, %v275
    %v277 = vpop.f32.mrb[0].mxu0
    %v278 = vadd.f32 %v100, %v277
    %v279 = vpop.f32.mrb[0].mxu0
    %v280 = vadd.f32 %v96, %v279
    %v281 = vpop.f32.mrb[0].mxu0
    %v282 = vadd.f32 %v100, %v281
    %283 = vmatprep.mubr.bf16.mxu0 0
    %284 = vmatmul.mubr.bf16.gmra.mrb[0].mxu0 %v137
    %v285 = vpop.f32.mrb[0].mxu0
    %v286 = vadd.f32 %v96, %v285
    %v287 = vpop.f32.mrb[0].mxu0
    %v288 = vadd.f32 %v100, %v287
    %v289 = vpop.f32.mrb[0].mxu0
    %v290 = vadd.f32 %v96, %v289
    %v291 = vpop.f32.mrb[0].mxu0
    %v292 = vadd.f32 %v100, %v291
    %293 = vmatprep.mubr.bf16.mxu0 0
    %294 = vmatmul.mubr.bf16.gmra.mrb[0].mxu0 %v138
    %v295 = vpop.f32.mrb[0].mxu0
    %v296 = vadd.f32 %v96, %v295
    %v297 = vpop.f32.mrb[0].mxu0
    %v298 = vadd.f32 %v100, %v297
    %v299 = vpop.f32.mrb[0].mxu0
    %v300 = vadd.f32 %v96, %v299
    %v301 = vpop.f32.mrb[0].mxu0
    %v302 = vadd.f32 %v100, %v301
    %303 = vmatprep.mubr.bf16.mxu0 0
    %304 = vmatmul.mubr.bf16.gmra.mrb[0].mxu0 %v139
    %v305 = vpop.f32.mrb[0].mxu0
    %v306 = vadd.f32 %v96, %v305
    %v307 = vpop.f32.mrb[0].mxu0
    %v308 = vadd.f32 %v100, %v307
    %v309 = vpop.f32.mrb[0].mxu0
    %v310 = vadd.f32 %v96, %v309
    %v311 = vpop.f32.mrb[0].mxu0
    %v312 = vadd.f32 %v100, %v311
    %313 = vmatprep.mubr.bf16.mxu0 0
    %314 = vmatmul.mubr.bf16.gmra.mrb[0].mxu0 %v140
    %v315 = vpop.f32.mrb[0].mxu0
    %v316 = vadd.f32 %v96, %v315
    %v317 = vpop.f32.mrb[0].mxu0
    %v318 = vadd.f32 %v100, %v317
    %v319 = vpop.f32.mrb[0].mxu0
    %v320 = vadd.f32 %v96, %v319
    %v321 = vpop.f32.mrb[0].mxu0
    %v322 = vadd.f32 %v100, %v321
    %323 = vmatprep.mubr.bf16.mxu0 0
    %324 = vmatmul.mubr.bf16.gmra.mrb[0].mxu0 %v141
    %v325 = vpop.f32.mrb[0].mxu0
    %v326 = vadd.f32 %v96, %v325
    %v327 = vpop.f32.mrb[0].mxu0
    %v328 = vadd.f32 %v100, %v327
    %v329 = vpop.f32.mrb[0].mxu0
    %v330 = vadd.f32 %v96, %v329
    %v331 = vpop.f32.mrb[0].mxu0
    %v332 = vadd.f32 %v100, %v331
    %333 = vmatprep.mubr.bf16.mxu0 0
    %334 = vmatmul.mubr.bf16.gmra.mrb[0].mxu0 %v142
    %v335 = vpop.f32.mrb[0].mxu0
    %v336 = vadd.f32 %v96, %v335
    %v337 = vpop.f32.mrb[0].mxu0
    %v338 = vadd.f32 %v100, %v337
    %v339 = vpop.f32.mrb[0].mxu0
    %v340 = vadd.f32 %v96, %v339
    %v341 = vpop.f32.mrb[0].mxu0
    %v342 = vadd.f32 %v100, %v341
    %343 = vdwg.mxu0
    %344 = vst [vmem:[#allocation2] sm:$0xff] %v266
    %345 = vst [vmem:[#allocation2 + $0x8] sm:$0xff] %v268
    %346 = vst [vmem:[#allocation2 + $0x10] sm:$0xff] %v270
    %347 = vst [vmem:[#allocation2 + $0x18] sm:$0xff] %v272
    %348 = vst [vmem:[#allocation2 + $0x20] sm:$0xff] %v276
    %349 = vst [vmem:[#allocation2 + $0x28] sm:$0xff] %v278
    %350 = vst [vmem:[#allocation2 + $0x30] sm:$0xff] %v280
    %351 = vst [vmem:[#allocation2 + $0x38] sm:$0xff] %v282
    %352 = vst [vmem:[#allocation2 + $0x40] sm:$0xff] %v286
    %353 = vst [vmem:[#allocation2 + $0x48] sm:$0xff] %v288
    %354 = vst [vmem:[#allocation2 + $0x50] sm:$0xff] %v290
    %355 = vst [vmem:[#allocation2 + $0x58] sm:$0xff] %v292
    %356 = vst [vmem:[#allocation2 + $0x60] sm:$0xff] %v296
    %357 = vst [vmem:[#allocation2 + $0x68] sm:$0xff] %v298
    %358 = vst [vmem:[#allocation2 + $0x70] sm:$0xff] %v300
    %359 = vst [vmem:[#allocation2 + $0x78] sm:$0xff] %v302
    %360 = vst [vmem:[#allocation2 + $0x80] sm:$0xff] %v306
    %361 = vst [vmem:[#allocation2 + $0x88] sm:$0xff] %v308
    %362 = vst [vmem:[#allocation2 + $0x90] sm:$0xff] %v310
    %363 = vst [vmem:[#allocation2 + $0x98] sm:$0xff] %v312
    %364 = vst [vmem:[#allocation2 + $0xa0] sm:$0xff] %v316
    %365 = vst [vmem:[#allocation2 + $0xa8] sm:$0xff] %v318
    %366 = vst [vmem:[#allocation2 + $0xb0] sm:$0xff] %v320
    %367 = vst [vmem:[#allocation2 + $0xb8] sm:$0xff] %v322
    %368 = vst [vmem:[#allocation2 + $0xc0] sm:$0xff] %v326
    %369 = vst [vmem:[#allocation2 + $0xc8] sm:$0xff] %v328
    %370 = vst [vmem:[#allocation2 + $0xd0] sm:$0xff] %v330
    %371 = vst [vmem:[#allocation2 + $0xd8] sm:$0xff] %v332
    %372 = vst [vmem:[#allocation2 + $0xe0] sm:$0xff] %v336
    %373 = vst [vmem:[#allocation2 + $0xe8] sm:$0xff] %v338
    %374 = vst [vmem:[#allocation2 + $0xf0] sm:$0xff] %v340
    %375 = vst [vmem:[#allocation2 + $0xf8] sm:$0xff] %v342
    %v376 = vld [vmem:[#allocation6] sm:$0xff]
    %v377 = vld [vmem:[#allocation6 + $0x8] sm:$0xff]
    %v378 = vld [vmem:[#allocation6 + $0x10] sm:$0xff]
    %v379 = vld [vmem:[#allocation6 + $0x18] sm:$0xff]
    %v380 = vld [vmem:[#allocation6 + $0x20] sm:$0xff]
    %v381 = vld [vmem:[#allocation6 + $0x28] sm:$0xff]
    %v382 = vld [vmem:[#allocation6 + $0x30] sm:$0xff]
    %v383 = vld [vmem:[#allocation6 + $0x38] sm:$0xff]
    %v384 = vlaneseq
    %v385 = vand.u32 %v384, 127
    %v386 = vadd.s32 %v385, 128
    %vm387 = vcmp.lt.s32.totalorder %v385, 0
    %v388 = vsub.s32 0, %v385
    %v389 = vsel %vm387, %v388, %v385
    %v390 = vshrl.u32 %v389, 6
    %v391 = vand.u32 %v389, 63
    %v392 = vsub.s32 0, %v391
    %v393 = vsel %vm387, %v392, %v391
    %vm394 = vcmp.lt.s32.totalorder %v386, 0
    %v395 = vsub.s32 0, %v386
    %v396 = vsel %vm394, %v395, %v386
    %v397 = vshrl.u32 %v396, 6
    %v398 = vand.u32 %v396, 63
    %v399 = vsub.s32 0, %v398
    %v400 = vsel %vm394, %v399, %v398
    %vm401 = vcmp.ne.s32.totalorder %v393, 0
    %vm402 = vcmp.ne.s32.totalorder %v400, 0
    %vm403 = vcmp.lt.s32.totalorder %v393, 0
    %vm404 = vcmp.lt.s32.totalorder %v400, 0
    %vm405 = vmand %vm403, %vm401
    %vm406 = vmand %vm404, %vm402
    %v407 = vadd.s32 %v393, 64
    %v408 = vadd.s32 %v400, 64
    %v409 = vsel %vm405, %v407, %v393
    %v410 = vsel %vm406, %v408, %v400
    %vm411 = vcmp.lt.s32.totalorder %v409, 32
    %vm412 = vcmp.lt.s32.totalorder %v410, 32
    %v413 = vld [vmem:[#allocation2] sm:$0xff]
    %v414 = vld [vmem:[#allocation2 + $0x8] sm:$0xff]
    %v415 = vld [vmem:[#allocation2 + $0x70] sm:$0xff]
    %v416 = vld [vmem:[#allocation2 + $0x78] sm:$0xff]
    %v417 = vsel %vm411, 1, 0
    %v418 = vsel %vm412, 1, 0
    %vm419 = vcmp.eq.s32.totalorder %v417, 1
    %vm420 = vcmp.eq.s32.totalorder %v418, 1
    %v421 = vsel %vm419, %v413, %v415
    %v422 = vsel %vm420, %v414, %v416
    %v431 = vunpack.c.l.b16 %v376
    %v432 = vunpack.c.h.b16 %v376
    %v433 = vunpack.c.l.b16 %v377
    %v434 = vunpack.c.h.b16 %v377
    %v435 = vunpack.c.l.b16 %v378
    %v436 = vunpack.c.h.b16 %v378
    %v437 = vunpack.c.l.b16 %v379
    %v438 = vunpack.c.h.b16 %v379
    %v439 = vunpack.c.l.b16 %v380
    %v440 = vunpack.c.h.b16 %v380
    %v441 = vunpack.c.l.b16 %v381
    %v442 = vunpack.c.h.b16 %v381
    %v443 = vunpack.c.l.b16 %v382
    %v444 = vunpack.c.h.b16 %v382
    %v445 = vunpack.c.l.b16 %v383
    %v446 = vunpack.c.h.b16 %v383
    %v447 = vpack.c.b16 %v433, %v431
    %v448 = vpack.c.b16 %v434, %v432
    %v449 = vpack.c.b16 %v437, %v435
    %v450 = vpack.c.b16 %v438, %v436
    %v451 = vpack.c.b16 %v441, %v439
    %v452 = vpack.c.b16 %v442, %v440
    %v453 = vpack.c.b16 %v445, %v443
    %v454 = vpack.c.b16 %v446, %v444
    %vm463 = vcmask 523264
    %v465 = vsel %vm463, 0, 0
    %467 = vmatprep.subr.bf16.mxu0 %v448
    %468 = vmatpush1.bf16.msra.mxu0 %v447
    %469 = vmatprep.subr.bf16.mxu0 %v450
    %470 = vmatpush1.bf16.msra.mxu0 %v449
    %471 = vmatprep.subr.bf16.mxu0 %v452
    %472 = vmatpush1.bf16.msra.mxu0 %v451
    %473 = vmatprep.subr.bf16.mxu0 %v454
    %474 = vmatpush1.bf16.msra.mxu0 %v453
    %475 = vmatprep.subr.bf16.mxu0 0
    %476 = vmatpush1.bf16.msra.mxu0 0
    %477 = vmatprep.subr.bf16.mxu0 0
    %478 = vmatpush1.bf16.msra.mxu0 0
    %479 = vmatprep.subr.bf16.mxu0 0
    %480 = vmatpush1.bf16.msra.mxu0 0
    %481 = vmatprep.subr.bf16.mxu0 0
    %482 = vmatpush1.bf16.msra.mxu0 0
    %483 = vmatprep.subr.bf16.mxu0 0
    %484 = vmatpush1.bf16.msra.mxu0 0
    %485 = vmatprep.subr.bf16.mxu0 0
    %486 = vmatpush1.bf16.msra.mxu0 0
    %487 = vmatprep.subr.bf16.mxu0 0
    %488 = vmatpush1.bf16.msra.mxu0 0
    %489 = vmatprep.subr.bf16.mxu0 0
    %490 = vmatpush1.bf16.msra.mxu0 0
    %491 = vmatprep.subr.bf16.mxu0 0
    %492 = vmatpush1.bf16.msra.mxu0 0
    %493 = vmatprep.subr.bf16.mxu0 0
    %494 = vmatpush1.bf16.msra.mxu0 0
    %495 = vmatprep.subr.bf16.mxu0 0
    %496 = vmatpush1.bf16.msra.mxu0 0
    %497 = vmatprep.subr.bf16.mxu0 0
    %498 = vmatpush1.bf16.msra.mxu0 0
    %499 = vmatprep.mubr.bf16.mxu0 0
    %500 = vmatmul.mubr.bf16.gmra.mrb[0].mxu0 %v465
    %v501 = vpop.f32.mrb[0].mxu0
    %v502 = vadd.f32 0.0, %v501
    %v503 = vpop.f32.mrb[0].mxu0
    %v504 = vadd.f32 0.0, %v503
    %v505 = vpop.f32.mrb[0].mxu0
    %v506 = vpop.f32.mrb[0].mxu0
    %507 = vdwg.mxu0
    %v508 = vadd.f32 %v421, %v502
    %v509 = vadd.f32 %v422, %v504
    %v510 = vxor.u32 %v508, 2147483648
    %v511 = vxor.u32 %v509, 2147483648
    %v512 = vmul.f32 %v510, 1.442695
    %v513 = vpow.pop %v512
    %v514 = vmul.f32 %v511, 1.442695
    %v515 = vpow.pop %v514
    %v516 = vadd.f32 %v513, 1.0
    %v517 = vadd.f32 %v515, 1.0
    %v518 = vrcp.pop %v516
    %v519 = vmul.f32 1.0, %v518
    %v520 = vrcp.pop %v517
    %v521 = vmul.f32 1.0, %v520
    %v522 = vtanh.pop %v509
    %v523 = vmul.f32 %v519, 0.0
    %v524 = vmul.f32 %v519, %v522
    %526 = vrot.lane.b32.xlu0 %v524, 64
    %v527 = vpop.permute.xlu0 %526
    %v529 = vadd.f32 %v523, %v527
    %v530 = vtanh.pop %v529
    %v531 = vmul.f32 %v521, %v530
    %v532 = vmax.f32 %v531, 0.0
    %v533 = vmax.f32 %v532, 0.0
    %v534 = vld [vmem:[#allocation2 + $0x10] sm:$0xff]
    %v535 = vld [vmem:[#allocation2 + $0x18] sm:$0xff]
    %v536 = vld [vmem:[#allocation2 + $0x60] sm:$0xff]
    %v537 = vld [vmem:[#allocation2 + $0x68] sm:$0xff]
    %v538 = vsel %vm419, %v534, %v536
    %v539 = vsel %vm420, %v535, %v537
    %v540 = vpack.c.bf16 %v531, %v531
    %542 = vrot.lane.b32.xlu0 %v540, 64
    %v543 = vpop.permute.xlu0 %542
    %v545 = vsel %vm463, %v543, 0
    %547 = vmatprep.subr.bf16.mxu0 %v448
    %548 = vmatpush1.bf16.msra.mxu0 %v447
    %549 = vmatprep.subr.bf16.mxu0 %v450
    %550 = vmatpush1.bf16.msra.mxu0 %v449
    %551 = vmatprep.subr.bf16.mxu0 %v452
    %552 = vmatpush1.bf16.msra.mxu0 %v451
    %553 = vmatprep.subr.bf16.mxu0 %v454
    %554 = vmatpush1.bf16.msra.mxu0 %v453
    %555 = vmatprep.subr.bf16.mxu0 0
    %556 = vmatpush1.bf16.msra.mxu0 0
    %557 = vmatprep.subr.bf16.mxu0 0
    %558 = vmatpush1.bf16.msra.mxu0 0
    %559 = vmatprep.subr.bf16.mxu0 0
    %560 = vmatpush1.bf16.msra.mxu0 0
    %561 = vmatprep.subr.bf16.mxu0 0
    %562 = vmatpush1.bf16.msra.mxu0 0
    %563 = vmatprep.subr.bf16.mxu0 0
    %564 = vmatpush1.bf16.msra.mxu0 0
    %565 = vmatprep.subr.bf16.mxu0 0
    %566 = vmatpush1.bf16.msra.mxu0 0
    %567 = vmatprep.subr.bf16.mxu0 0
    %568 = vmatpush1.bf16.msra.mxu0 0
    %569 = vmatprep.subr.bf16.mxu0 0
    %570 = vmatpush1.bf16.msra.mxu0 0
    %571 = vmatprep.subr.bf16.mxu0 0
    %572 = vmatpush1.bf16.msra.mxu0 0
    %573 = vmatprep.subr.bf16.mxu0 0
    %574 = vmatpush1.bf16.msra.mxu0 0
    %575 = vmatprep.subr.bf16.mxu0 0
    %576 = vmatpush1.bf16.msra.mxu0 0
    %577 = vmatprep.subr.bf16.mxu0 0
    %578 = vmatpush1.bf16.msra.mxu0 0
    %579 = vmatprep.mubr.bf16.mxu0 0
    %580 = vmatmul.mubr.bf16.gmra.mrb[0].mxu0 %v545
    %v581 = vpop.f32.mrb[0].mxu0
    %v582 = vadd.f32 0.0, %v581
    %v583 = vpop.f32.mrb[0].mxu0
    %v584 = vadd.f32 0.0, %v583
    %v585 = vpop.f32.mrb[0].mxu0
    %v586 = vpop.f32.mrb[0].mxu0
    %587 = vdwg.mxu0
    %v588 = vadd.f32 %v538, %v582
    %v589 = vadd.f32 %v539, %v584
    %v590 = vxor.u32 %v588, 2147483648
    %v591 = vxor.u32 %v589, 2147483648
    %v592 = vmul.f32 %v590, 1.442695
    %v593 = vpow.pop %v592
    %v594 = vmul.f32 %v591, 1.442695
    %v595 = vpow.pop %v594
    %v596 = vadd.f32 %v593, 1.0
    %v597 = vadd.f32 %v595, 1.0
    %v598 = vrcp.pop %v596
    %v599 = vmul.f32 1.0, %v598
    %v600 = vrcp.pop %v597
    %v601 = vmul.f32 1.0, %v600
    %v602 = vtanh.pop %v589
    %v603 = vmul.f32 %v599, %v529
    %v604 = vmul.f32 %v599, %v602
    %606 = vrot.lane.b32.xlu0 %v604, 64
    %v607 = vpop.permute.xlu0 %606
    %v609 = vadd.f32 %v603, %v607
    %v610 = vtanh.pop %v609
    %v611 = vmul.f32 %v601, %v610
    %v612 = vmax.f32 %v611, 0.0
    %v613 = vmax.f32 %v533, %v612
    %v614 = vld [vmem:[#allocation2 + $0x20] sm:$0xff]
    %v615 = vld [vmem:[#allocation2 + $0x28] sm:$0xff]
    %v616 = vld [vmem:[#allocation2 + $0x50] sm:$0xff]
    %v617 = vld [vmem:[#allocation2 + $0x58] sm:$0xff]
    %v618 = vsel %vm419, %v614, %v616
    %v619 = vsel %vm420, %v615, %v617
    %v620 = vpack.c.bf16 %v611, %v611
    %622 = vrot.lane.b32.xlu0 %v620, 64
    %v623 = vpop.permute.xlu0 %622
    %v625 = vsel %vm463, %v623, 0
    %627 = vmatprep.subr.bf16.mxu0 %v448
    %628 = vmatpush1.bf16.msra.mxu0 %v447
    %629 = vmatprep.subr.bf16.mxu0 %v450
    %630 = vmatpush1.bf16.msra.mxu0 %v449
    %631 = vmatprep.subr.bf16.mxu0 %v452
    %632 = vmatpush1.bf16.msra.mxu0 %v451
    %633 = vmatprep.subr.bf16.mxu0 %v454
    %634 = vmatpush1.bf16.msra.mxu0 %v453
    %635 = vmatprep.subr.bf16.mxu0 0
    %636 = vmatpush1.bf16.msra.mxu0 0
    %637 = vmatprep.subr.bf16.mxu0 0
    %638 = vmatpush1.bf16.msra.mxu0 0
    %639 = vmatprep.subr.bf16.mxu0 0
    %640 = vmatpush1.bf16.msra.mxu0 0
    %641 = vmatprep.subr.bf16.mxu0 0
    %642 = vmatpush1.bf16.msra.mxu0 0
    %643 = vmatprep.subr.bf16.mxu0 0
    %644 = vmatpush1.bf16.msra.mxu0 0
    %645 = vmatprep.subr.bf16.mxu0 0
    %646 = vmatpush1.bf16.msra.mxu0 0
    %647 = vmatprep.subr.bf16.mxu0 0
    %648 = vmatpush1.bf16.msra.mxu0 0
    %649 = vmatprep.subr.bf16.mxu0 0
    %650 = vmatpush1.bf16.msra.mxu0 0
    %651 = vmatprep.subr.bf16.mxu0 0
    %652 = vmatpush1.bf16.msra.mxu0 0
    %653 = vmatprep.subr.bf16.mxu0 0
    %654 = vmatpush1.bf16.msra.mxu0 0
    %655 = vmatprep.subr.bf16.mxu0 0
    %656 = vmatpush1.bf16.msra.mxu0 0
    %657 = vmatprep.subr.bf16.mxu0 0
    %658 = vmatpush1.bf16.msra.mxu0 0
    %659 = vmatprep.mubr.bf16.mxu0 0
    %660 = vmatmul.mubr.bf16.gmra.mrb[0].mxu0 %v625
    %v661 = vpop.f32.mrb[0].mxu0
    %v662 = vadd.f32 0.0, %v661
    %v663 = vpop.f32.mrb[0].mxu0
    %v664 = vadd.f32 0.0, %v663
    %v665 = vpop.f32.mrb[0].mxu0
    %v666 = vpop.f32.mrb[0].mxu0
    %667 = vdwg.mxu0
    %v668 = vadd.f32 %v618, %v662
    %v669 = vadd.f32 %v619, %v664
    %v670 = vxor.u32 %v668, 2147483648
    %v671 = vxor.u32 %v669, 2147483648
    %v672 = vmul.f32 %v670, 1.442695
    %v673 = vpow.pop %v672
    %v674 = vmul.f32 %v671, 1.442695
    %v675 = vpow.pop %v674
    %v676 = vadd.f32 %v673, 1.0
    %v677 = vadd.f32 %v675, 1.0
    %v678 = vrcp.pop %v676
    %v679 = vmul.f32 1.0, %v678
    %v680 = vrcp.pop %v677
    %v681 = vmul.f32 1.0, %v680
    %v682 = vtanh.pop %v669
    %v683 = vmul.f32 %v679, %v609
    %v684 = vmul.f32 %v679, %v682
    %686 = vrot.lane.b32.xlu0 %v684, 64
    %v687 = vpop.permute.xlu0 %686
    %v689 = vadd.f32 %v683, %v687
    %v690 = vtanh.pop %v689
    %v691 = vmul.f32 %v681, %v690
    %v692 = vmax.f32 %v691, 0.0
    %v693 = vmax.f32 %v613, %v692
    %v694 = vld [vmem:[#allocation2 + $0x30] sm:$0xff]
    %v695 = vld [vmem:[#allocation2 + $0x38] sm:$0xff]
    %v696 = vld [vmem:[#allocation2 + $0x40] sm:$0xff]
    %v697 = vld [vmem:[#allocation2 + $0x48] sm:$0xff]
    %v698 = vsel %vm419, %v694, %v696
    %v699 = vsel %vm420, %v695, %v697
    %v700 = vpack.c.bf16 %v691, %v691
    %702 = vrot.lane.b32.xlu0 %v700, 64
    %v703 = vpop.permute.xlu0 %702
    %v705 = vsel %vm463, %v703, 0
    %707 = vmatprep.subr.bf16.mxu0 %v448
    %708 = vmatpush1.bf16.msra.mxu0 %v447
    %709 = vmatprep.subr.bf16.mxu0 %v450
    %710 = vmatpush1.bf16.msra.mxu0 %v449
    %711 = vmatprep.subr.bf16.mxu0 %v452
    %712 = vmatpush1.bf16.msra.mxu0 %v451
    %713 = vmatprep.subr.bf16.mxu0 %v454
    %714 = vmatpush1.bf16.msra.mxu0 %v453
    %715 = vmatprep.subr.bf16.mxu0 0
    %716 = vmatpush1.bf16.msra.mxu0 0
    %717 = vmatprep.subr.bf16.mxu0 0
    %718 = vmatpush1.bf16.msra.mxu0 0
    %719 = vmatprep.subr.bf16.mxu0 0
    %720 = vmatpush1.bf16.msra.mxu0 0
    %721 = vmatprep.subr.bf16.mxu0 0
    %722 = vmatpush1.bf16.msra.mxu0 0
    %723 = vmatprep.subr.bf16.mxu0 0
    %724 = vmatpush1.bf16.msra.mxu0 0
    %725 = vmatprep.subr.bf16.mxu0 0
    %726 = vmatpush1.bf16.msra.mxu0 0
    %727 = vmatprep.subr.bf16.mxu0 0
    %728 = vmatpush1.bf16.msra.mxu0 0
    %729 = vmatprep.subr.bf16.mxu0 0
    %730 = vmatpush1.bf16.msra.mxu0 0
    %731 = vmatprep.subr.bf16.mxu0 0
    %732 = vmatpush1.bf16.msra.mxu0 0
    %733 = vmatprep.subr.bf16.mxu0 0
    %734 = vmatpush1.bf16.msra.mxu0 0
    %735 = vmatprep.subr.bf16.mxu0 0
    %736 = vmatpush1.bf16.msra.mxu0 0
    %737 = vmatprep.subr.bf16.mxu0 0
    %738 = vmatpush1.bf16.msra.mxu0 0
    %739 = vmatprep.mubr.bf16.mxu0 0
    %740 = vmatmul.mubr.bf16.gmra.mrb[0].mxu0 %v705
    %v741 = vpop.f32.mrb[0].mxu0
    %v742 = vadd.f32 0.0, %v741
    %v743 = vpop.f32.mrb[0].mxu0
    %v744 = vadd.f32 0.0, %v743
    %v745 = vpop.f32.mrb[0].mxu0
    %v746 = vpop.f32.mrb[0].mxu0
    %747 = vdwg.mxu0
    %v748 = vadd.f32 %v698, %v742
    %v749 = vadd.f32 %v699, %v744
    %v750 = vxor.u32 %v748, 2147483648
    %v751 = vxor.u32 %v749, 2147483648
    %v752 = vmul.f32 %v750, 1.442695
    %v753 = vpow.pop %v752
    %v754 = vmul.f32 %v751, 1.442695
    %v755 = vpow.pop %v754
    %v756 = vadd.f32 %v753, 1.0
    %v757 = vadd.f32 %v755, 1.0
    %v758 = vrcp.pop %v756
    %v759 = vmul.f32 1.0, %v758
    %v760 = vrcp.pop %v757
    %v761 = vmul.f32 1.0, %v760
    %v762 = vtanh.pop %v749
    %v763 = vmul.f32 %v759, %v689
    %v764 = vmul.f32 %v759, %v762
    %766 = vrot.lane.b32.xlu0 %v764, 64
    %v767 = vpop.permute.xlu0 %766
    %v769 = vadd.f32 %v763, %v767
    %v770 = vtanh.pop %v769
    %v771 = vmul.f32 %v761, %v770
    %v772 = vmax.f32 %v771, 0.0
    %v773 = vmax.f32 %v693, %v772
    %v774 = vsel %vm419, %v696, %v694
    %v775 = vsel %vm420, %v697, %v695
    %v776 = vpack.c.bf16 %v771, %v771
    %778 = vrot.lane.b32.xlu0 %v776, 64
    %v779 = vpop.permute.xlu0 %778
    %v781 = vsel %vm463, %v779, 0
    %783 = vmatprep.subr.bf16.mxu0 %v448
    %784 = vmatpush1.bf16.msra.mxu0 %v447
    %785 = vmatprep.subr.bf16.mxu0 %v450
    %786 = vmatpush1.bf16.msra.mxu0 %v449
    %787 = vmatprep.subr.bf16.mxu0 %v452
    %788 = vmatpush1.bf16.msra.mxu0 %v451
    %789 = vmatprep.subr.bf16.mxu0 %v454
    %790 = vmatpush1.bf16.msra.mxu0 %v453
    %791 = vmatprep.subr.bf16.mxu0 0
    %792 = vmatpush1.bf16.msra.mxu0 0
    %793 = vmatprep.subr.bf16.mxu0 0
    %794 = vmatpush1.bf16.msra.mxu0 0
    %795 = vmatprep.subr.bf16.mxu0 0
    %796 = vmatpush1.bf16.msra.mxu0 0
    %797 = vmatprep.subr.bf16.mxu0 0
    %798 = vmatpush1.bf16.msra.mxu0 0
    %799 = vmatprep.subr.bf16.mxu0 0
    %800 = vmatpush1.bf16.msra.mxu0 0
    %801 = vmatprep.subr.bf16.mxu0 0
    %802 = vmatpush1.bf16.msra.mxu0 0
    %803 = vmatprep.subr.bf16.mxu0 0
    %804 = vmatpush1.bf16.msra.mxu0 0
    %805 = vmatprep.subr.bf16.mxu0 0
    %806 = vmatpush1.bf16.msra.mxu0 0
    %807 = vmatprep.subr.bf16.mxu0 0
    %808 = vmatpush1.bf16.msra.mxu0 0
    %809 = vmatprep.subr.bf16.mxu0 0
    %810 = vmatpush1.bf16.msra.mxu0 0
    %811 = vmatprep.subr.bf16.mxu0 0
    %812 = vmatpush1.bf16.msra.mxu0 0
    %813 = vmatprep.subr.bf16.mxu0 0
    %814 = vmatpush1.bf16.msra.mxu0 0
    %815 = vmatprep.mubr.bf16.mxu0 0
    %816 = vmatmul.mubr.bf16.gmra.mrb[0].mxu0 %v781
    %v817 = vpop.f32.mrb[0].mxu0
    %v818 = vadd.f32 0.0, %v817
    %v819 = vpop.f32.mrb[0].mxu0
    %v820 = vadd.f32 0.0, %v819
    %v821 = vpop.f32.mrb[0].mxu0
    %v822 = vpop.f32.mrb[0].mxu0
    %823 = vdwg.mxu0
    %v824 = vadd.f32 %v774, %v818
    %v825 = vadd.f32 %v775, %v820
    %v826 = vxor.u32 %v824, 2147483648
    %v827 = vxor.u32 %v825, 2147483648
    %v828 = vmul.f32 %v826, 1.442695
    %v829 = vpow.pop %v828
    %v830 = vmul.f32 %v827, 1.442695
    %v831 = vpow.pop %v830
    %v832 = vadd.f32 %v829, 1.0
    %v833 = vadd.f32 %v831, 1.0
    %v834 = vrcp.pop %v832
    %v835 = vmul.f32 1.0, %v834
    %v836 = vrcp.pop %v833
    %v837 = vmul.f32 1.0, %v836
    %v838 = vtanh.pop %v825
    %v839 = vmul.f32 %v835, %v769
    %v840 = vmul.f32 %v835, %v838
    %842 = vrot.lane.b32.xlu0 %v840, 64
    %v843 = vpop.permute.xlu0 %842
    %v845 = vadd.f32 %v839, %v843
    %v846 = vtanh.pop %v845
    %v847 = vmul.f32 %v837, %v846
    %v848 = vmax.f32 %v847, 0.0
    %v849 = vmax.f32 %v773, %v848
    %v850 = vsel %vm419, %v616, %v614
    %v851 = vsel %vm420, %v617, %v615
    %v852 = vpack.c.bf16 %v847, %v847
    %854 = vrot.lane.b32.xlu0 %v852, 64
    %v855 = vpop.permute.xlu0 %854
    %v857 = vsel %vm463, %v855, 0
    %859 = vmatprep.subr.bf16.mxu0 %v448
    %860 = vmatpush1.bf16.msra.mxu0 %v447
    %861 = vmatprep.subr.bf16.mxu0 %v450
    %862 = vmatpush1.bf16.msra.mxu0 %v449
    %863 = vmatprep.subr.bf16.mxu0 %v452
    %864 = vmatpush1.bf16.msra.mxu0 %v451
    %865 = vmatprep.subr.bf16.mxu0 %v454
    %866 = vmatpush1.bf16.msra.mxu0 %v453
    %867 = vmatprep.subr.bf16.mxu0 0
    %868 = vmatpush1.bf16.msra.mxu0 0
    %869 = vmatprep.subr.bf16.mxu0 0
    %870 = vmatpush1.bf16.msra.mxu0 0
    %871 = vmatprep.subr.bf16.mxu0 0
    %872 = vmatpush1.bf16.msra.mxu0 0
    %873 = vmatprep.subr.bf16.mxu0 0
    %874 = vmatpush1.bf16.msra.mxu0 0
    %875 = vmatprep.subr.bf16.mxu0 0
    %876 = vmatpush1.bf16.msra.mxu0 0
    %877 = vmatprep.subr.bf16.mxu0 0
    %878 = vmatpush1.bf16.msra.mxu0 0
    %879 = vmatprep.subr.bf16.mxu0 0
    %880 = vmatpush1.bf16.msra.mxu0 0
    %881 = vmatprep.subr.bf16.mxu0 0
    %882 = vmatpush1.bf16.msra.mxu0 0
    %883 = vmatprep.subr.bf16.mxu0 0
    %884 = vmatpush1.bf16.msra.mxu0 0
    %885 = vmatprep.subr.bf16.mxu0 0
    %886 = vmatpush1.bf16.msra.mxu0 0
    %887 = vmatprep.subr.bf16.mxu0 0
    %888 = vmatpush1.bf16.msra.mxu0 0
    %889 = vmatprep.subr.bf16.mxu0 0
    %890 = vmatpush1.bf16.msra.mxu0 0
    %891 = vmatprep.mubr.bf16.mxu0 0
    %892 = vmatmul.mubr.bf16.gmra.mrb[0].mxu0 %v857
    %v893 = vpop.f32.mrb[0].mxu0
    %v894 = vadd.f32 0.0, %v893
    %v895 = vpop.f32.mrb[0].mxu0
    %v896 = vadd.f32 0.0, %v895
    %v897 = vpop.f32.mrb[0].mxu0
    %v898 = vpop.f32.mrb[0].mxu0
    %899 = vdwg.mxu0
    %v900 = vadd.f32 %v850, %v894
    %v901 = vadd.f32 %v851, %v896
    %v902 = vxor.u32 %v900, 2147483648
    %v903 = vxor.u32 %v901, 2147483648
    %v904 = vmul.f32 %v902, 1.442695
    %v905 = vpow.pop %v904
    %v906 = vmul.f32 %v903, 1.442695
    %v907 = vpow.pop %v906
    %v908 = vadd.f32 %v905, 1.0
    %v909 = vadd.f32 %v907, 1.0
    %v910 = vrcp.pop %v908
    %v911 = vmul.f32 1.0, %v910
    %v912 = vrcp.pop %v909
    %v913 = vmul.f32 1.0, %v912
    %v914 = vtanh.pop %v901
    %v915 = vmul.f32 %v911, %v845
    %v916 = vmul.f32 %v911, %v914
    %918 = vrot.lane.b32.xlu0 %v916, 64
    %v919 = vpop.permute.xlu0 %918
    %v921 = vadd.f32 %v915, %v919
    %v922 = vtanh.pop %v921
    %v923 = vmul.f32 %v913, %v922
    %v924 = vmax.f32 %v923, 0.0
    %v925 = vmax.f32 %v849, %v924
    %v926 = vsel %vm419, %v536, %v534
    %v927 = vsel %vm420, %v537, %v535
    %v928 = vpack.c.bf16 %v923, %v923
    %930 = vrot.lane.b32.xlu0 %v928, 64
    %v931 = vpop.permute.xlu0 %930
    %v933 = vsel %vm463, %v931, 0
    %935 = vmatprep.subr.bf16.mxu0 %v448
    %936 = vmatpush1.bf16.msra.mxu0 %v447
    %937 = vmatprep.subr.bf16.mxu0 %v450
    %938 = vmatpush1.bf16.msra.mxu0 %v449
    %939 = vmatprep.subr.bf16.mxu0 %v452
    %940 = vmatpush1.bf16.msra.mxu0 %v451
    %941 = vmatprep.subr.bf16.mxu0 %v454
    %942 = vmatpush1.bf16.msra.mxu0 %v453
    %943 = vmatprep.subr.bf16.mxu0 0
    %944 = vmatpush1.bf16.msra.mxu0 0
    %945 = vmatprep.subr.bf16.mxu0 0
    %946 = vmatpush1.bf16.msra.mxu0 0
    %947 = vmatprep.subr.bf16.mxu0 0
    %948 = vmatpush1.bf16.msra.mxu0 0
    %949 = vmatprep.subr.bf16.mxu0 0
    %950 = vmatpush1.bf16.msra.mxu0 0
    %951 = vmatprep.subr.bf16.mxu0 0
    %952 = vmatpush1.bf16.msra.mxu0 0
    %953 = vmatprep.subr.bf16.mxu0 0
    %954 = vmatpush1.bf16.msra.mxu0 0
    %955 = vmatprep.subr.bf16.mxu0 0
    %956 = vmatpush1.bf16.msra.mxu0 0
    %957 = vmatprep.subr.bf16.mxu0 0
    %958 = vmatpush1.bf16.msra.mxu0 0
    %959 = vmatprep.subr.bf16.mxu0 0
    %960 = vmatpush1.bf16.msra.mxu0 0
    %961 = vmatprep.subr.bf16.mxu0 0
    %962 = vmatpush1.bf16.msra.mxu0 0
    %963 = vmatprep.subr.bf16.mxu0 0
    %964 = vmatpush1.bf16.msra.mxu0 0
    %965 = vmatprep.subr.bf16.mxu0 0
    %966 = vmatpush1.bf16.msra.mxu0 0
    %967 = vmatprep.mubr.bf16.mxu0 0
    %968 = vmatmul.mubr.bf16.gmra.mrb[0].mxu0 %v933
    %v969 = vpop.f32.mrb[0].mxu0
    %v970 = vadd.f32 0.0, %v969
    %v971 = vpop.f32.mrb[0].mxu0
    %v972 = vadd.f32 0.0, %v971
    %v973 = vpop.f32.mrb[0].mxu0
    %v974 = vpop.f32.mrb[0].mxu0
    %975 = vdwg.mxu0
    %v976 = vadd.f32 %v926, %v970
    %v977 = vadd.f32 %v927, %v972
    %v978 = vxor.u32 %v976, 2147483648
    %v979 = vxor.u32 %v977, 2147483648
    %v980 = vmul.f32 %v978, 1.442695
    %v981 = vpow.pop %v980
    %v982 = vmul.f32 %v979, 1.442695
    %v983 = vpow.pop %v982
    %v984 = vadd.f32 %v981, 1.0
    %v985 = vadd.f32 %v983, 1.0
    %v986 = vrcp.pop %v984
    %v987 = vmul.f32 1.0, %v986
    %v988 = vrcp.pop %v985
    %v989 = vmul.f32 1.0, %v988
    %v990 = vtanh.pop %v977
    %v991 = vmul.f32 %v987, %v921
    %v992 = vmul.f32 %v987, %v990
    %994 = vrot.lane.b32.xlu0 %v992, 64
    %v995 = vpop.permute.xlu0 %994
    %v997 = vadd.f32 %v991, %v995
    %v998 = vtanh.pop %v997
    %v999 = vmul.f32 %v989, %v998
    %v1000 = vmax.f32 %v999, 0.0
    %v1001 = vmax.f32 %v925, %v1000
    %v1002 = vsel %vm419, %v415, %v413
    %v1003 = vsel %vm420, %v416, %v414
    %v1004 = vpack.c.bf16 %v999, %v999
    %1006 = vrot.lane.b32.xlu0 %v1004, 64
    %v1007 = vpop.permute.xlu0 %1006
    %v1009 = vsel %vm463, %v1007, 0
    %1011 = vmatprep.subr.bf16.mxu0 %v448
    %1012 = vmatpush1.bf16.msra.mxu0 %v447
    %1013 = vmatprep.subr.bf16.mxu0 %v450
    %1014 = vmatpush1.bf16.msra.mxu0 %v449
    %1015 = vmatprep.subr.bf16.mxu0 %v452
    %1016 = vmatpush1.bf16.msra.mxu0 %v451
    %1017 = vmatprep.subr.bf16.mxu0 %v454
    %1018 = vmatpush1.bf16.msra.mxu0 %v453
    %1019 = vmatprep.subr.bf16.mxu0 0
    %1020 = vmatpush1.bf16.msra.mxu0 0
    %1021 = vmatprep.subr.bf16.mxu0 0
    %1022 = vmatpush1.bf16.msra.mxu0 0
    %1023 = vmatprep.subr.bf16.mxu0 0
    %1024 = vmatpush1.bf16.msra.mxu0 0
    %1025 = vmatprep.subr.bf16.mxu0 0
    %1026 = vmatpush1.bf16.msra.mxu0 0
    %1027 = vmatprep.subr.bf16.mxu0 0
    %1028 = vmatpush1.bf16.msra.mxu0 0
    %1029 = vmatprep.subr.bf16.mxu0 0
    %1030 = vmatpush1.bf16.msra.mxu0 0
    %1031 = vmatprep.subr.bf16.mxu0 0
    %1032 = vmatpush1.bf16.msra.mxu0 0
    %1033 = vmatprep.subr.bf16.mxu0 0
    %1034 = vmatpush1.bf16.msra.mxu0 0
    %1035 = vmatprep.subr.bf16.mxu0 0
    %1036 = vmatpush1.bf16.msra.mxu0 0
    %1037 = vmatprep.subr.bf16.mxu0 0
    %1038 = vmatpush1.bf16.msra.mxu0 0
    %1039 = vmatprep.subr.bf16.mxu0 0
    %1040 = vmatpush1.bf16.msra.mxu0 0
    %1041 = vmatprep.subr.bf16.mxu0 0
    %1042 = vmatpush1.bf16.msra.mxu0 0
    %1043 = vmatprep.mubr.bf16.mxu0 0
    %1044 = vmatmul.mubr.bf16.gmra.mrb[0].mxu0 %v1009
    %v1045 = vpop.f32.mrb[0].mxu0
    %v1046 = vadd.f32 0.0, %v1045
    %v1047 = vpop.f32.mrb[0].mxu0
    %v1048 = vadd.f32 0.0, %v1047
    %v1049 = vpop.f32.mrb[0].mxu0
    %v1050 = vpop.f32.mrb[0].mxu0
    %1051 = vdwg.mxu0
    %v1052 = vadd.f32 %v1002, %v1046
    %v1053 = vadd.f32 %v1003, %v1048
    %v1054 = vxor.u32 %v1052, 2147483648
    %v1055 = vxor.u32 %v1053, 2147483648
    %v1056 = vmul.f32 %v1054, 1.442695
    %v1057 = vpow.pop %v1056
    %v1058 = vmul.f32 %v1055, 1.442695
    %v1059 = vpow.pop %v1058
    %v1060 = vadd.f32 %v1057, 1.0
    %v1061 = vadd.f32 %v1059, 1.0
    %v1062 = vrcp.pop %v1060
    %v1063 = vmul.f32 1.0, %v1062
    %v1064 = vrcp.pop %v1061
    %v1065 = vmul.f32 1.0, %v1064
    %v1066 = vtanh.pop %v1053
    %v1067 = vmul.f32 %v1063, %v997
    %v1068 = vmul.f32 %v1063, %v1066
    %1070 = vrot.lane.b32.xlu0 %v1068, 64
    %v1071 = vpop.permute.xlu0 %1070
    %v1073 = vadd.f32 %v1067, %v1071
    %v1074 = vtanh.pop %v1073
    %v1075 = vmul.f32 %v1065, %v1074
    %v1076 = vmax.f32 %v1075, 0.0
    %v1077 = vmax.f32 %v1001, %v1076
    %v1078 = vld [vmem:[#allocation2 + $0x80] sm:$0xff]
    %v1079 = vld [vmem:[#allocation2 + $0x88] sm:$0xff]
    %v1080 = vld [vmem:[#allocation2 + $0xf0] sm:$0xff]
    %v1081 = vld [vmem:[#allocation2 + $0xf8] sm:$0xff]
    %v1082 = vsel %vm419, %v1078, %v1080
    %v1083 = vsel %vm420, %v1079, %v1081
    %v1084 = vpack.c.bf16 %v1075, %v1075
    %1086 = vrot.lane.b32.xlu0 %v1084, 64
    %v1087 = vpop.permute.xlu0 %1086
    %v1089 = vsel %vm463, %v1087, 0
    %1091 = vmatprep.subr.bf16.mxu0 %v448
    %1092 = vmatpush1.bf16.msra.mxu0 %v447
    %1093 = vmatprep.subr.bf16.mxu0 %v450
    %1094 = vmatpush1.bf16.msra.mxu0 %v449
    %1095 = vmatprep.subr.bf16.mxu0 %v452
    %1096 = vmatpush1.bf16.msra.mxu0 %v451
    %1097 = vmatprep.subr.bf16.mxu0 %v454
    %1098 = vmatpush1.bf16.msra.mxu0 %v453
    %1099 = vmatprep.subr.bf16.mxu0 0
    %1100 = vmatpush1.bf16.msra.mxu0 0
    %1101 = vmatprep.subr.bf16.mxu0 0
    %1102 = vmatpush1.bf16.msra.mxu0 0
    %1103 = vmatprep.subr.bf16.mxu0 0
    %1104 = vmatpush1.bf16.msra.mxu0 0
    %1105 = vmatprep.subr.bf16.mxu0 0
    %1106 = vmatpush1.bf16.msra.mxu0 0
    %1107 = vmatprep.subr.bf16.mxu0 0
    %1108 = vmatpush1.bf16.msra.mxu0 0
    %1109 = vmatprep.subr.bf16.mxu0 0
    %1110 = vmatpush1.bf16.msra.mxu0 0
    %1111 = vmatprep.subr.bf16.mxu0 0
    %1112 = vmatpush1.bf16.msra.mxu0 0
    %1113 = vmatprep.subr.bf16.mxu0 0
    %1114 = vmatpush1.bf16.msra.mxu0 0
    %1115 = vmatprep.subr.bf16.mxu0 0
    %1116 = vmatpush1.bf16.msra.mxu0 0
    %1117 = vmatprep.subr.bf16.mxu0 0
    %1118 = vmatpush1.bf16.msra.mxu0 0
    %1119 = vmatprep.subr.bf16.mxu0 0
    %1120 = vmatpush1.bf16.msra.mxu0 0
    %1121 = vmatprep.subr.bf16.mxu0 0
    %1122 = vmatpush1.bf16.msra.mxu0 0
    %1123 = vmatprep.mubr.bf16.mxu0 0
    %1124 = vmatmul.mubr.bf16.gmra.mrb[0].mxu0 %v1089
    %v1125 = vpop.f32.mrb[0].mxu0
    %v1126 = vadd.f32 0.0, %v1125
    %v1127 = vpop.f32.mrb[0].mxu0
    %v1128 = vadd.f32 0.0, %v1127
    %v1129 = vpop.f32.mrb[0].mxu0
    %v1130 = vpop.f32.mrb[0].mxu0
    %1131 = vdwg.mxu0
    %v1132 = vadd.f32 %v1082, %v1126
    %v1133 = vadd.f32 %v1083, %v1128
    %v1134 = vxor.u32 %v1132, 2147483648
    %v1135 = vxor.u32 %v1133, 2147483648
    %v1136 = vmul.f32 %v1134, 1.442695
    %v1137 = vpow.pop %v1136
    %v1138 = vmul.f32 %v1135, 1.442695
    %v1139 = vpow.pop %v1138
    %v1140 = vadd.f32 %v1137, 1.0
    %v1141 = vadd.f32 %v1139, 1.0
    %v1142 = vrcp.pop %v1140
    %v1143 = vmul.f32 1.0, %v1142
    %v1144 = vrcp.pop %v1141
    %v1145 = vmul.f32 1.0, %v1144
    %v1146 = vtanh.pop %v1133
    %v1147 = vmul.f32 %v1143, %v1073
    %v1148 = vmul.f32 %v1143, %v1146
    %1150 = vrot.lane.b32.xlu0 %v1148, 64
    %v1151 = vpop.permute.xlu0 %1150
    %v1153 = vadd.f32 %v1147, %v1151
    %v1154 = vtanh.pop %v1153
    %v1155 = vmul.f32 %v1145, %v1154
    %v1156 = vmax.f32 %v1155, 0.0
    %v1157 = vmax.f32 %v1156, 0.0
    %v1158 = vld [vmem:[#allocation2 + $0x90] sm:$0xff]
    %v1159 = vld [vmem:[#allocation2 + $0x98] sm:$0xff]
    %v1160 = vld [vmem:[#allocation2 + $0xe0] sm:$0xff]
    %v1161 = vld [vmem:[#allocation2 + $0xe8] sm:$0xff]
    %v1162 = vsel %vm419, %v1158, %v1160
    %v1163 = vsel %vm420, %v1159, %v1161
    %v1164 = vpack.c.bf16 %v1155, %v1155
    %1166 = vrot.lane.b32.xlu0 %v1164, 64
    %v1167 = vpop.permute.xlu0 %1166
    %v1169 = vsel %vm463, %v1167, 0
    %1171 = vmatprep.subr.bf16.mxu0 %v448
    %1172 = vmatpush1.bf16.msra.mxu0 %v447
    %1173 = vmatprep.subr.bf16.mxu0 %v450
    %1174 = vmatpush1.bf16.msra.mxu0 %v449
    %1175 = vmatprep.subr.bf16.mxu0 %v452
    %1176 = vmatpush1.bf16.msra.mxu0 %v451
    %1177 = vmatprep.subr.bf16.mxu0 %v454
    %1178 = vmatpush1.bf16.msra.mxu0 %v453
    %1179 = vmatprep.subr.bf16.mxu0 0
    %1180 = vmatpush1.bf16.msra.mxu0 0
    %1181 = vmatprep.subr.bf16.mxu0 0
    %1182 = vmatpush1.bf16.msra.mxu0 0
    %1183 = vmatprep.subr.bf16.mxu0 0
    %1184 = vmatpush1.bf16.msra.mxu0 0
    %1185 = vmatprep.subr.bf16.mxu0 0
    %1186 = vmatpush1.bf16.msra.mxu0 0
    %1187 = vmatprep.subr.bf16.mxu0 0
    %1188 = vmatpush1.bf16.msra.mxu0 0
    %1189 = vmatprep.subr.bf16.mxu0 0
    %1190 = vmatpush1.bf16.msra.mxu0 0
    %1191 = vmatprep.subr.bf16.mxu0 0
    %1192 = vmatpush1.bf16.msra.mxu0 0
    %1193 = vmatprep.subr.bf16.mxu0 0
    %1194 = vmatpush1.bf16.msra.mxu0 0
    %1195 = vmatprep.subr.bf16.mxu0 0
    %1196 = vmatpush1.bf16.msra.mxu0 0
    %1197 = vmatprep.subr.bf16.mxu0 0
    %1198 = vmatpush1.bf16.msra.mxu0 0
    %1199 = vmatprep.subr.bf16.mxu0 0
    %1200 = vmatpush1.bf16.msra.mxu0 0
    %1201 = vmatprep.subr.bf16.mxu0 0
    %1202 = vmatpush1.bf16.msra.mxu0 0
    %1203 = vmatprep.mubr.bf16.mxu0 0
    %1204 = vmatmul.mubr.bf16.gmra.mrb[0].mxu0 %v1169
    %v1205 = vpop.f32.mrb[0].mxu0
    %v1206 = vadd.f32 0.0, %v1205
    %v1207 = vpop.f32.mrb[0].mxu0
    %v1208 = vadd.f32 0.0, %v1207
    %v1209 = vpop.f32.mrb[0].mxu0
    %v1210 = vpop.f32.mrb[0].mxu0
    %1211 = vdwg.mxu0
    %v1212 = vadd.f32 %v1162, %v1206
    %v1213 = vadd.f32 %v1163, %v1208
    %v1214 = vxor.u32 %v1212, 2147483648
    %v1215 = vxor.u32 %v1213, 2147483648
    %v1216 = vmul.f32 %v1214, 1.442695
    %v1217 = vpow.pop %v1216
    %v1218 = vmul.f32 %v1215, 1.442695
    %v1219 = vpow.pop %v1218
    %v1220 = vadd.f32 %v1217, 1.0
    %v1221 = vadd.f32 %v1219, 1.0
    %v1222 = vrcp.pop %v1220
    %v1223 = vmul.f32 1.0, %v1222
    %v1224 = vrcp.pop %v1221
    %v1225 = vmul.f32 1.0, %v1224
    %v1226 = vtanh.pop %v1213
    %v1227 = vmul.f32 %v1223, %v1153
    %v1228 = vmul.f32 %v1223, %v1226
    %1230 = vrot.lane.b32.xlu0 %v1228, 64
    %v1231 = vpop.permute.xlu0 %1230
    %v1233 = vadd.f32 %v1227, %v1231
    %v1234 = vtanh.pop %v1233
    %v1235 = vmul.f32 %v1225, %v1234
    %v1236 = vmax.f32 %v1235, 0.0
    %v1237 = vmax.f32 %v1157, %v1236
    %v1238 = vld [vmem:[#allocation2 + $0xa0] sm:$0xff]
    %v1239 = vld [vmem:[#allocation2 + $0xa8] sm:$0xff]
    %v1240 = vld [vmem:[#allocation2 + $0xd0] sm:$0xff]
    %v1241 = vld [vmem:[#allocation2 + $0xd8] sm:$0xff]
    %v1242 = vsel %vm419, %v1238, %v1240
    %v1243 = vsel %vm420, %v1239, %v1241
    %v1244 = vpack.c.bf16 %v1235, %v1235
    %1246 = vrot.lane.b32.xlu0 %v1244, 64
    %v1247 = vpop.permute.xlu0 %1246
    %v1249 = vsel %vm463, %v1247, 0
    %1251 = vmatprep.subr.bf16.mxu0 %v448
    %1252 = vmatpush1.bf16.msra.mxu0 %v447
    %1253 = vmatprep.subr.bf16.mxu0 %v450
    %1254 = vmatpush1.bf16.msra.mxu0 %v449
    %1255 = vmatprep.subr.bf16.mxu0 %v452
    %1256 = vmatpush1.bf16.msra.mxu0 %v451
    %1257 = vmatprep.subr.bf16.mxu0 %v454
    %1258 = vmatpush1.bf16.msra.mxu0 %v453
    %1259 = vmatprep.subr.bf16.mxu0 0
    %1260 = vmatpush1.bf16.msra.mxu0 0
    %1261 = vmatprep.subr.bf16.mxu0 0
    %1262 = vmatpush1.bf16.msra.mxu0 0
    %1263 = vmatprep.subr.bf16.mxu0 0
    %1264 = vmatpush1.bf16.msra.mxu0 0
    %1265 = vmatprep.subr.bf16.mxu0 0
    %1266 = vmatpush1.bf16.msra.mxu0 0
    %1267 = vmatprep.subr.bf16.mxu0 0
    %1268 = vmatpush1.bf16.msra.mxu0 0
    %1269 = vmatprep.subr.bf16.mxu0 0
    %1270 = vmatpush1.bf16.msra.mxu0 0
    %1271 = vmatprep.subr.bf16.mxu0 0
    %1272 = vmatpush1.bf16.msra.mxu0 0
    %1273 = vmatprep.subr.bf16.mxu0 0
    %1274 = vmatpush1.bf16.msra.mxu0 0
    %1275 = vmatprep.subr.bf16.mxu0 0
    %1276 = vmatpush1.bf16.msra.mxu0 0
    %1277 = vmatprep.subr.bf16.mxu0 0
    %1278 = vmatpush1.bf16.msra.mxu0 0
    %1279 = vmatprep.subr.bf16.mxu0 0
    %1280 = vmatpush1.bf16.msra.mxu0 0
    %1281 = vmatprep.subr.bf16.mxu0 0
    %1282 = vmatpush1.bf16.msra.mxu0 0
    %1283 = vmatprep.mubr.bf16.mxu0 0
    %1284 = vmatmul.mubr.bf16.gmra.mrb[0].mxu0 %v1249
    %v1285 = vpop.f32.mrb[0].mxu0
    %v1286 = vadd.f32 0.0, %v1285
    %v1287 = vpop.f32.mrb[0].mxu0
    %v1288 = vadd.f32 0.0, %v1287
    %v1289 = vpop.f32.mrb[0].mxu0
    %v1290 = vpop.f32.mrb[0].mxu0
    %1291 = vdwg.mxu0
    %v1292 = vadd.f32 %v1242, %v1286
    %v1293 = vadd.f32 %v1243, %v1288
    %v1294 = vxor.u32 %v1292, 2147483648
    %v1295 = vxor.u32 %v1293, 2147483648
    %v1296 = vmul.f32 %v1294, 1.442695
    %v1297 = vpow.pop %v1296
    %v1298 = vmul.f32 %v1295, 1.442695
    %v1299 = vpow.pop %v1298
    %v1300 = vadd.f32 %v1297, 1.0
    %v1301 = vadd.f32 %v1299, 1.0
    %v1302 = vrcp.pop %v1300
    %v1303 = vmul.f32 1.0, %v1302
    %v1304 = vrcp.pop %v1301
    %v1305 = vmul.f32 1.0, %v1304
    %v1306 = vtanh.pop %v1293
    %v1307 = vmul.f32 %v1303, %v1233
    %v1308 = vmul.f32 %v1303, %v1306
    %1310 = vrot.lane.b32.xlu0 %v1308, 64
    %v1311 = vpop.permute.xlu0 %1310
    %v1313 = vadd.f32 %v1307, %v1311
    %v1314 = vtanh.pop %v1313
    %v1315 = vmul.f32 %v1305, %v1314
    %v1316 = vmax.f32 %v1315, 0.0
    %v1317 = vmax.f32 %v1237, %v1316
    %v1318 = vld [vmem:[#allocation2 + $0xb0] sm:$0xff]
    %v1319 = vld [vmem:[#allocation2 + $0xb8] sm:$0xff]
    %v1320 = vld [vmem:[#allocation2 + $0xc0] sm:$0xff]
    %v1321 = vld [vmem:[#allocation2 + $0xc8] sm:$0xff]
    %v1322 = vsel %vm419, %v1318, %v1320
    %v1323 = vsel %vm420, %v1319, %v1321
    %v1324 = vpack.c.bf16 %v1315, %v1315
    %1326 = vrot.lane.b32.xlu0 %v1324, 64
    %v1327 = vpop.permute.xlu0 %1326
    %v1329 = vsel %vm463, %v1327, 0
    %1331 = vmatprep.subr.bf16.mxu0 %v448
    %1332 = vmatpush1.bf16.msra.mxu0 %v447
    %1333 = vmatprep.subr.bf16.mxu0 %v450
    %1334 = vmatpush1.bf16.msra.mxu0 %v449
    %1335 = vmatprep.subr.bf16.mxu0 %v452
    %1336 = vmatpush1.bf16.msra.mxu0 %v451
    %1337 = vmatprep.subr.bf16.mxu0 %v454
    %1338 = vmatpush1.bf16.msra.mxu0 %v453
    %1339 = vmatprep.subr.bf16.mxu0 0
    %1340 = vmatpush1.bf16.msra.mxu0 0
    %1341 = vmatprep.subr.bf16.mxu0 0
    %1342 = vmatpush1.bf16.msra.mxu0 0
    %1343 = vmatprep.subr.bf16.mxu0 0
    %1344 = vmatpush1.bf16.msra.mxu0 0
    %1345 = vmatprep.subr.bf16.mxu0 0
    %1346 = vmatpush1.bf16.msra.mxu0 0
    %1347 = vmatprep.subr.bf16.mxu0 0
    %1348 = vmatpush1.bf16.msra.mxu0 0
    %1349 = vmatprep.subr.bf16.mxu0 0
    %1350 = vmatpush1.bf16.msra.mxu0 0
    %1351 = vmatprep.subr.bf16.mxu0 0
    %1352 = vmatpush1.bf16.msra.mxu0 0
    %1353 = vmatprep.subr.bf16.mxu0 0
    %1354 = vmatpush1.bf16.msra.mxu0 0
    %1355 = vmatprep.subr.bf16.mxu0 0
    %1356 = vmatpush1.bf16.msra.mxu0 0
    %1357 = vmatprep.subr.bf16.mxu0 0
    %1358 = vmatpush1.bf16.msra.mxu0 0
    %1359 = vmatprep.subr.bf16.mxu0 0
    %1360 = vmatpush1.bf16.msra.mxu0 0
    %1361 = vmatprep.subr.bf16.mxu0 0
    %1362 = vmatpush1.bf16.msra.mxu0 0
    %1363 = vmatprep.mubr.bf16.mxu0 0
    %1364 = vmatmul.mubr.bf16.gmra.mrb[0].mxu0 %v1329
    %v1365 = vpop.f32.mrb[0].mxu0
    %v1366 = vadd.f32 0.0, %v1365
    %v1367 = vpop.f32.mrb[0].mxu0
    %v1368 = vadd.f32 0.0, %v1367
    %v1369 = vpop.f32.mrb[0].mxu0
    %v1370 = vpop.f32.mrb[0].mxu0
    %1371 = vdwg.mxu0
    %v1372 = vadd.f32 %v1322, %v1366
    %v1373 = vadd.f32 %v1323, %v1368
    %v1374 = vxor.u32 %v1372, 2147483648
    %v1375 = vxor.u32 %v1373, 2147483648
    %v1376 = vmul.f32 %v1374, 1.442695
    %v1377 = vpow.pop %v1376
    %v1378 = vmul.f32 %v1375, 1.442695
    %v1379 = vpow.pop %v1378
    %v1380 = vadd.f32 %v1377, 1.0
    %v1381 = vadd.f32 %v1379, 1.0
    %v1382 = vrcp.pop %v1380
    %v1383 = vmul.f32 1.0, %v1382
    %v1384 = vrcp.pop %v1381
    %v1385 = vmul.f32 1.0, %v1384
    %v1386 = vtanh.pop %v1373
    %v1387 = vmul.f32 %v1383, %v1313
    %v1388 = vmul.f32 %v1383, %v1386
    %1390 = vrot.lane.b32.xlu0 %v1388, 64
    %v1391 = vpop.permute.xlu0 %1390
    %v1393 = vadd.f32 %v1387, %v1391
    %v1394 = vtanh.pop %v1393
    %v1395 = vmul.f32 %v1385, %v1394
    %v1396 = vmax.f32 %v1395, 0.0
    %v1397 = vmax.f32 %v1317, %v1396
    %v1398 = vsel %vm419, %v1320, %v1318
    %v1399 = vsel %vm420, %v1321, %v1319
    %v1400 = vpack.c.bf16 %v1395, %v1395
    %1402 = vrot.lane.b32.xlu0 %v1400, 64
    %v1403 = vpop.permute.xlu0 %1402
    %v1405 = vsel %vm463, %v1403, 0
    %1407 = vmatprep.subr.bf16.mxu0 %v448
    %1408 = vmatpush1.bf16.msra.mxu0 %v447
    %1409 = vmatprep.subr.bf16.mxu0 %v450
    %1410 = vmatpush1.bf16.msra.mxu0 %v449
    %1411 = vmatprep.subr.bf16.mxu0 %v452
    %1412 = vmatpush1.bf16.msra.mxu0 %v451
    %1413 = vmatprep.subr.bf16.mxu0 %v454
    %1414 = vmatpush1.bf16.msra.mxu0 %v453
    %1415 = vmatprep.subr.bf16.mxu0 0
    %1416 = vmatpush1.bf16.msra.mxu0 0
    %1417 = vmatprep.subr.bf16.mxu0 0
    %1418 = vmatpush1.bf16.msra.mxu0 0
    %1419 = vmatprep.subr.bf16.mxu0 0
    %1420 = vmatpush1.bf16.msra.mxu0 0
    %1421 = vmatprep.subr.bf16.mxu0 0
    %1422 = vmatpush1.bf16.msra.mxu0 0
    %1423 = vmatprep.subr.bf16.mxu0 0
    %1424 = vmatpush1.bf16.msra.mxu0 0
    %1425 = vmatprep.subr.bf16.mxu0 0
    %1426 = vmatpush1.bf16.msra.mxu0 0
    %1427 = vmatprep.subr.bf16.mxu0 0
    %1428 = vmatpush1.bf16.msra.mxu0 0
    %1429 = vmatprep.subr.bf16.mxu0 0
    %1430 = vmatpush1.bf16.msra.mxu0 0
    %1431 = vmatprep.subr.bf16.mxu0 0
    %1432 = vmatpush1.bf16.msra.mxu0 0
    %1433 = vmatprep.subr.bf16.mxu0 0
    %1434 = vmatpush1.bf16.msra.mxu0 0
    %1435 = vmatprep.subr.bf16.mxu0 0
    %1436 = vmatpush1.bf16.msra.mxu0 0
    %1437 = vmatprep.subr.bf16.mxu0 0
    %1438 = vmatpush1.bf16.msra.mxu0 0
    %1439 = vmatprep.mubr.bf16.mxu0 0
    %1440 = vmatmul.mubr.bf16.gmra.mrb[0].mxu0 %v1405
    %v1441 = vpop.f32.mrb[0].mxu0
    %v1442 = vadd.f32 0.0, %v1441
    %v1443 = vpop.f32.mrb[0].mxu0
    %v1444 = vadd.f32 0.0, %v1443
    %v1445 = vpop.f32.mrb[0].mxu0
    %v1446 = vpop.f32.mrb[0].mxu0
    %1447 = vdwg.mxu0
    %v1448 = vadd.f32 %v1398, %v1442
    %v1449 = vadd.f32 %v1399, %v1444
    %v1450 = vxor.u32 %v1448, 2147483648
    %v1451 = vxor.u32 %v1449, 2147483648
    %v1452 = vmul.f32 %v1450, 1.442695
    %v1453 = vpow.pop %v1452
    %v1454 = vmul.f32 %v1451, 1.442695
    %v1455 = vpow.pop %v1454
    %v1456 = vadd.f32 %v1453, 1.0
    %v1457 = vadd.f32 %v1455, 1.0
    %v1458 = vrcp.pop %v1456
    %v1459 = vmul.f32 1.0, %v1458
    %v1460 = vrcp.pop %v1457
    %v1461 = vmul.f32 1.0, %v1460
    %v1462 = vtanh.pop %v1449
    %v1463 = vmul.f32 %v1459, %v1393
    %v1464 = vmul.f32 %v1459, %v1462
    %1466 = vrot.lane.b32.xlu0 %v1464, 64
    %v1467 = vpop.permute.xlu0 %1466
    %v1469 = vadd.f32 %v1463, %v1467
    %v1470 = vtanh.pop %v1469
    %v1471 = vmul.f32 %v1461, %v1470
    %v1472 = vmax.f32 %v1471, 0.0
    %v1473 = vmax.f32 %v1397, %v1472
    %v1474 = vsel %vm419, %v1240, %v1238
    %v1475 = vsel %vm420, %v1241, %v1239
    %v1476 = vpack.c.bf16 %v1471, %v1471
    %1478 = vrot.lane.b32.xlu0 %v1476, 64
    %v1479 = vpop.permute.xlu0 %1478
    %v1481 = vsel %vm463, %v1479, 0
    %1483 = vmatprep.subr.bf16.mxu0 %v448
    %1484 = vmatpush1.bf16.msra.mxu0 %v447
    %1485 = vmatprep.subr.bf16.mxu0 %v450
    %1486 = vmatpush1.bf16.msra.mxu0 %v449
    %1487 = vmatprep.subr.bf16.mxu0 %v452
    %1488 = vmatpush1.bf16.msra.mxu0 %v451
    %1489 = vmatprep.subr.bf16.mxu0 %v454
    %1490 = vmatpush1.bf16.msra.mxu0 %v453
    %1491 = vmatprep.subr.bf16.mxu0 0
    %1492 = vmatpush1.bf16.msra.mxu0 0
    %1493 = vmatprep.subr.bf16.mxu0 0
    %1494 = vmatpush1.bf16.msra.mxu0 0
    %1495 = vmatprep.subr.bf16.mxu0 0
    %1496 = vmatpush1.bf16.msra.mxu0 0
    %1497 = vmatprep.subr.bf16.mxu0 0
    %1498 = vmatpush1.bf16.msra.mxu0 0
    %1499 = vmatprep.subr.bf16.mxu0 0
    %1500 = vmatpush1.bf16.msra.mxu0 0
    %1501 = vmatprep.subr.bf16.mxu0 0
    %1502 = vmatpush1.bf16.msra.mxu0 0
    %1503 = vmatprep.subr.bf16.mxu0 0
    %1504 = vmatpush1.bf16.msra.mxu0 0
    %1505 = vmatprep.subr.bf16.mxu0 0
    %1506 = vmatpush1.bf16.msra.mxu0 0
    %1507 = vmatprep.subr.bf16.mxu0 0
    %1508 = vmatpush1.bf16.msra.mxu0 0
    %1509 = vmatprep.subr.bf16.mxu0 0
    %1510 = vmatpush1.bf16.msra.mxu0 0
    %1511 = vmatprep.subr.bf16.mxu0 0
    %1512 = vmatpush1.bf16.msra.mxu0 0
    %1513 = vmatprep.subr.bf16.mxu0 0
    %1514 = vmatpush1.bf16.msra.mxu0 0
    %1515 = vmatprep.mubr.bf16.mxu0 0
    %1516 = vmatmul.mubr.bf16.gmra.mrb[0].mxu0 %v1481
    %v1517 = vpop.f32.mrb[0].mxu0
    %v1518 = vadd.f32 0.0, %v1517
    %v1519 = vpop.f32.mrb[0].mxu0
    %v1520 = vadd.f32 0.0, %v1519
    %v1521 = vpop.f32.mrb[0].mxu0
    %v1522 = vpop.f32.mrb[0].mxu0
    %1523 = vdwg.mxu0
    %v1524 = vadd.f32 %v1474, %v1518
    %v1525 = vadd.f32 %v1475, %v1520
    %v1526 = vxor.u32 %v1524, 2147483648
    %v1527 = vxor.u32 %v1525, 2147483648
    %v1528 = vmul.f32 %v1526, 1.442695
    %v1529 = vpow.pop %v1528
    %v1530 = vmul.f32 %v1527, 1.442695
    %v1531 = vpow.pop %v1530
    %v1532 = vadd.f32 %v1529, 1.0
    %v1533 = vadd.f32 %v1531, 1.0
    %v1534 = vrcp.pop %v1532
    %v1535 = vmul.f32 1.0, %v1534
    %v1536 = vrcp.pop %v1533
    %v1537 = vmul.f32 1.0, %v1536
    %v1538 = vtanh.pop %v1525
    %v1539 = vmul.f32 %v1535, %v1469
    %v1540 = vmul.f32 %v1535, %v1538
    %1542 = vrot.lane.b32.xlu0 %v1540, 64
    %v1543 = vpop.permute.xlu0 %1542
    %v1545 = vadd.f32 %v1539, %v1543
    %v1546 = vtanh.pop %v1545
    %v1547 = vmul.f32 %v1537, %v1546
    %v1548 = vmax.f32 %v1547, 0.0
    %v1549 = vmax.f32 %v1473, %v1548
    %v1550 = vsel %vm419, %v1160, %v1158
    %v1551 = vsel %vm420, %v1161, %v1159
    %v1552 = vpack.c.bf16 %v1547, %v1547
    %1554 = vrot.lane.b32.xlu0 %v1552, 64
    %v1555 = vpop.permute.xlu0 %1554
    %v1557 = vsel %vm463, %v1555, 0
    %1559 = vmatprep.subr.bf16.mxu0 %v448
    %1560 = vmatpush1.bf16.msra.mxu0 %v447
    %1561 = vmatprep.subr.bf16.mxu0 %v450
    %1562 = vmatpush1.bf16.msra.mxu0 %v449
    %1563 = vmatprep.subr.bf16.mxu0 %v452
    %1564 = vmatpush1.bf16.msra.mxu0 %v451
    %1565 = vmatprep.subr.bf16.mxu0 %v454
    %1566 = vmatpush1.bf16.msra.mxu0 %v453
    %1567 = vmatprep.subr.bf16.mxu0 0
    %1568 = vmatpush1.bf16.msra.mxu0 0
    %1569 = vmatprep.subr.bf16.mxu0 0
    %1570 = vmatpush1.bf16.msra.mxu0 0
    %1571 = vmatprep.subr.bf16.mxu0 0
    %1572 = vmatpush1.bf16.msra.mxu0 0
    %1573 = vmatprep.subr.bf16.mxu0 0
    %1574 = vmatpush1.bf16.msra.mxu0 0
    %1575 = vmatprep.subr.bf16.mxu0 0
    %1576 = vmatpush1.bf16.msra.mxu0 0
    %1577 = vmatprep.subr.bf16.mxu0 0
    %1578 = vmatpush1.bf16.msra.mxu0 0
    %1579 = vmatprep.subr.bf16.mxu0 0
    %1580 = vmatpush1.bf16.msra.mxu0 0
    %1581 = vmatprep.subr.bf16.mxu0 0
    %1582 = vmatpush1.bf16.msra.mxu0 0
    %1583 = vmatprep.subr.bf16.mxu0 0
    %1584 = vmatpush1.bf16.msra.mxu0 0
    %1585 = vmatprep.subr.bf16.mxu0 0
    %1586 = vmatpush1.bf16.msra.mxu0 0
    %1587 = vmatprep.subr.bf16.mxu0 0
    %1588 = vmatpush1.bf16.msra.mxu0 0
    %1589 = vmatprep.subr.bf16.mxu0 0
    %1590 = vmatpush1.bf16.msra.mxu0 0
    %1591 = vmatprep.mubr.bf16.mxu0 0
    %1592 = vmatmul.mubr.bf16.gmra.mrb[0].mxu0 %v1557
    %v1593 = vpop.f32.mrb[0].mxu0
    %v1594 = vadd.f32 0.0, %v1593
    %v1595 = vpop.f32.mrb[0].mxu0
    %v1596 = vadd.f32 0.0, %v1595
    %v1597 = vpop.f32.mrb[0].mxu0
    %v1598 = vpop.f32.mrb[0].mxu0
    %1599 = vdwg.mxu0
    %v1600 = vadd.f32 %v1550, %v1594
    %v1601 = vadd.f32 %v1551, %v1596
    %v1602 = vxor.u32 %v1600, 2147483648
    %v1603 = vxor.u32 %v1601, 2147483648
    %v1604 = vmul.f32 %v1602, 1.442695
    %v1605 = vpow.pop %v1604
    %v1606 = vmul.f32 %v1603, 1.442695
    %v1607 = vpow.pop %v1606
    %v1608 = vadd.f32 %v1605, 1.0
    %v1609 = vadd.f32 %v1607, 1.0
    %v1610 = vrcp.pop %v1608
    %v1611 = vmul.f32 1.0, %v1610
    %v1612 = vrcp.pop %v1609
    %v1613 = vmul.f32 1.0, %v1612
    %v1614 = vtanh.pop %v1601
    %v1615 = vmul.f32 %v1611, %v1545
    %v1616 = vmul.f32 %v1611, %v1614
    %1618 = vrot.lane.b32.xlu0 %v1616, 64
    %v1619 = vpop.permute.xlu0 %1618
    %v1621 = vadd.f32 %v1615, %v1619
    %v1622 = vtanh.pop %v1621
    %v1623 = vmul.f32 %v1613, %v1622
    %v1624 = vmax.f32 %v1623, 0.0
    %v1625 = vmax.f32 %v1549, %v1624
    %v1626 = vsel %vm419, %v1080, %v1078
    %v1627 = vsel %vm420, %v1081, %v1079
    %v1628 = vpack.c.bf16 %v1623, %v1623
    %1630 = vrot.lane.b32.xlu0 %v1628, 64
    %v1631 = vpop.permute.xlu0 %1630
    %v1633 = vsel %vm463, %v1631, 0
    %1635 = vmatprep.subr.bf16.mxu0 %v448
    %1636 = vmatpush1.bf16.msra.mxu0 %v447
    %1637 = vmatprep.subr.bf16.mxu0 %v450
    %1638 = vmatpush1.bf16.msra.mxu0 %v449
    %1639 = vmatprep.subr.bf16.mxu0 %v452
    %1640 = vmatpush1.bf16.msra.mxu0 %v451
    %1641 = vmatprep.subr.bf16.mxu0 %v454
    %1642 = vmatpush1.bf16.msra.mxu0 %v453
    %1643 = vmatprep.subr.bf16.mxu0 0
    %1644 = vmatpush1.bf16.msra.mxu0 0
    %1645 = vmatprep.subr.bf16.mxu0 0
    %1646 = vmatpush1.bf16.msra.mxu0 0
    %1647 = vmatprep.subr.bf16.mxu0 0
    %1648 = vmatpush1.bf16.msra.mxu0 0
    %1649 = vmatprep.subr.bf16.mxu0 0
    %1650 = vmatpush1.bf16.msra.mxu0 0
    %1651 = vmatprep.subr.bf16.mxu0 0
    %1652 = vmatpush1.bf16.msra.mxu0 0
    %1653 = vmatprep.subr.bf16.mxu0 0
    %1654 = vmatpush1.bf16.msra.mxu0 0
    %1655 = vmatprep.subr.bf16.mxu0 0
    %1656 = vmatpush1.bf16.msra.mxu0 0
    %1657 = vmatprep.subr.bf16.mxu0 0
    %1658 = vmatpush1.bf16.msra.mxu0 0
    %1659 = vmatprep.subr.bf16.mxu0 0
    %1660 = vmatpush1.bf16.msra.mxu0 0
    %1661 = vmatprep.subr.bf16.mxu0 0
    %1662 = vmatpush1.bf16.msra.mxu0 0
    %1663 = vmatprep.subr.bf16.mxu0 0
    %1664 = vmatpush1.bf16.msra.mxu0 0
    %1665 = vmatprep.subr.bf16.mxu0 0
    %1666 = vmatpush1.bf16.msra.mxu0 0
    %1667 = vmatprep.mubr.bf16.mxu0 0
    %1668 = vmatmul.mubr.bf16.gmra.mrb[0].mxu0 %v1633
    %v1669 = vpop.f32.mrb[0].mxu0
    %v1670 = vadd.f32 0.0, %v1669
    %v1671 = vpop.f32.mrb[0].mxu0
    %v1672 = vadd.f32 0.0, %v1671
    %v1673 = vpop.f32.mrb[0].mxu0
    %v1674 = vpop.f32.mrb[0].mxu0
    %1675 = vdwg.mxu0
    %v1676 = vadd.f32 %v1626, %v1670
    %v1677 = vadd.f32 %v1627, %v1672
    %v1678 = vxor.u32 %v1676, 2147483648
    %v1679 = vxor.u32 %v1677, 2147483648
    %v1680 = vmul.f32 %v1678, 1.442695
    %v1681 = vpow.pop %v1680
    %v1682 = vmul.f32 %v1679, 1.442695
    %v1683 = vpow.pop %v1682
    %v1684 = vadd.f32 %v1681, 1.0
    %v1685 = vadd.f32 %v1683, 1.0
    %v1686 = vrcp.pop %v1684
    %v1687 = vmul.f32 1.0, %v1686
    %v1688 = vrcp.pop %v1685
    %v1689 = vmul.f32 1.0, %v1688
    %v1690 = vtanh.pop %v1677
    %v1691 = vmul.f32 %v1687, %v1621
    %v1692 = vmul.f32 %v1687, %v1690
    %1694 = vrot.lane.b32.xlu0 %v1692, 64
    %v1695 = vpop.permute.xlu0 %1694
    %v1697 = vadd.f32 %v1691, %v1695
    %v1698 = vtanh.pop %v1697
    %v1699 = vmul.f32 %v1689, %v1698
    %v1700 = vmax.f32 %v1699, 0.0
    %v1701 = vmax.f32 %v1625, %v1700
    %1703 = vrot.lane.b32.xlu0 %v1077, 64
    %v1704 = vpop.permute.xlu0 %1703
    %v1706 = vsel %vm463, %v1704, %v1701
    %v1707 = vpack.c.bf16 %v1706, %v1706
    %v1708 = vld [vmem:[%s4] sm:$0xf]
    %v1709 = vld [vmem:[%s4 + $0x4] sm:$0xf]
    %v1710 = vld [vmem:[%s4 + $0x8] sm:$0xf]
    %v1711 = vld [vmem:[%s4 + $0xc] sm:$0xf]
    %v1712 = vld [vmem:[%s4 + $0x10] sm:$0xf]
    %v1713 = vld [vmem:[%s4 + $0x14] sm:$0xf]
    %v1714 = vld [vmem:[%s4 + $0x18] sm:$0xf]
    %v1715 = vld [vmem:[%s4 + $0x1c] sm:$0xf]
    %v1716 = vld [vmem:[%s4 + $0x20] sm:$0xf]
    %v1717 = vld [vmem:[%s4 + $0x24] sm:$0xf]
    %v1718 = vld [vmem:[%s4 + $0x28] sm:$0xf]
    %v1719 = vld [vmem:[%s4 + $0x2c] sm:$0xf]
    %v1720 = vld [vmem:[%s4 + $0x30] sm:$0xf]
    %v1721 = vld [vmem:[%s4 + $0x34] sm:$0xf]
    %v1722 = vld [vmem:[%s4 + $0x38] sm:$0xf]
    %v1723 = vld [vmem:[%s4 + $0x3c] sm:$0xf]
    %v1724 = vld [vmem:[%s5] sm:$0x1]
    %v1726 = vlaneseq
    %v1727 = vshrl.u32 %v1726, 7
    %v1728 = vsub.s32 0, %v1727
    %v1729 = vrot.slane %v1724, %v1728
    %v1747 = vunpack.c.l.b16 %v1708
    %v1748 = vunpack.c.l.b16 %v1709
    %v1749 = vunpack.c.l.b16 %v1710
    %v1750 = vunpack.c.l.b16 %v1711
    %v1751 = vunpack.c.l.b16 %v1712
    %v1752 = vunpack.c.l.b16 %v1713
    %v1753 = vunpack.c.l.b16 %v1714
    %v1754 = vunpack.c.l.b16 %v1715
    %v1755 = vunpack.c.l.b16 %v1716
    %v1756 = vunpack.c.l.b16 %v1717
    %v1757 = vunpack.c.l.b16 %v1718
    %v1758 = vunpack.c.l.b16 %v1719
    %v1759 = vunpack.c.l.b16 %v1720
    %v1760 = vunpack.c.l.b16 %v1721
    %v1761 = vunpack.c.l.b16 %v1722
    %v1762 = vunpack.c.l.b16 %v1723
    %v1763 = vpack.c.b16 %v1748, %v1747
    %v1764 = vpack.c.b16 %v1750, %v1749
    %v1765 = vpack.c.b16 %v1752, %v1751
    %v1766 = vpack.c.b16 %v1754, %v1753
    %v1767 = vpack.c.b16 %v1756, %v1755
    %v1768 = vpack.c.b16 %v1758, %v1757
    %v1769 = vpack.c.b16 %v1760, %v1759
    %v1770 = vpack.c.b16 %v1762, %v1761
    %1779 = vmatprep.subr.bf16.mxu0 0
    %1780 = vmatpush1.bf16.msra.mxu0 %v1763
    %1781 = vmatprep.subr.bf16.mxu0 0
    %1782 = vmatpush1.bf16.msra.mxu0 %v1764
    %1783 = vmatprep.subr.bf16.mxu0 0
    %1784 = vmatpush1.bf16.msra.mxu0 %v1765
    %1785 = vmatprep.subr.bf16.mxu0 0
    %1786 = vmatpush1.bf16.msra.mxu0 %v1766
    %1787 = vmatprep.subr.bf16.mxu0 0
    %1788 = vmatpush1.bf16.msra.mxu0 %v1767
    %1789 = vmatprep.subr.bf16.mxu0 0
    %1790 = vmatpush1.bf16.msra.mxu0 %v1768
    %1791 = vmatprep.subr.bf16.mxu0 0
    %1792 = vmatpush1.bf16.msra.mxu0 %v1769
    %1793 = vmatprep.subr.bf16.mxu0 0
    %1794 = vmatpush1.bf16.msra.mxu0 %v1770
    %1795 = vmatprep.subr.bf16.mxu0 0
    %1796 = vmatpush1.bf16.msra.mxu0 0
    %1797 = vmatprep.subr.bf16.mxu0 0
    %1798 = vmatpush1.bf16.msra.mxu0 0
    %1799 = vmatprep.subr.bf16.mxu0 0
    %1800 = vmatpush1.bf16.msra.mxu0 0
    %1801 = vmatprep.subr.bf16.mxu0 0
    %1802 = vmatpush1.bf16.msra.mxu0 0
    %1803 = vmatprep.subr.bf16.mxu0 0
    %1804 = vmatpush1.bf16.msra.mxu0 0
    %1805 = vmatprep.subr.bf16.mxu0 0
    %1806 = vmatpush1.bf16.msra.mxu0 0
    %1807 = vmatprep.subr.bf16.mxu0 0
    %1808 = vmatpush1.bf16.msra.mxu0 0
    %1809 = vmatprep.subr.bf16.mxu0 0
    %1810 = vmatpush1.bf16.msra.mxu0 0
    %1811 = vmatprep.mubr.bf16.mxu0 0
    %1812 = vmatmul.mubr.bf16.gmra.mrb[0].mxu0 %v1707
    %v1813 = vpop.f32.mrb[0].mxu0
    %v1814 = vadd.f32 %v1729, %v1813
    %v1815 = vpop.f32.mrb[0].mxu0
    %v1816 = vpop.f32.mrb[0].mxu0
    %v1817 = vpop.f32.mrb[0].mxu0
    %1818 = vdwg.mxu0
    %v1819 = vmax.f32 %v1814, 0.0
    %v1820 = vpack.c.bf16 %v1819, %v1819
    %v1821 = vld [vmem:[%s6] sm:$0xf]
    %v1822 = vld [vmem:[%s6 + $0x4] sm:$0xf]
    %v1823 = vld [vmem:[%s6 + $0x8] sm:$0xf]
    %v1824 = vld [vmem:[%s6 + $0xc] sm:$0xf]
    %v1825 = vld [vmem:[%s6 + $0x10] sm:$0xf]
    %v1826 = vld [vmem:[%s6 + $0x14] sm:$0xf]
    %v1827 = vld [vmem:[%s6 + $0x18] sm:$0xf]
    %v1828 = vld [vmem:[%s6 + $0x1c] sm:$0xf]
    %v1829 = vld [vmem:[%s7] sm:$0x1]
    %v1831 = vlaneseq
    %v1832 = vshrl.u32 %v1831, 7
    %v1833 = vsub.s32 0, %v1832
    %v1834 = vrot.slane %v1829, %v1833
    %v1844 = vunpack.c.l.b16 %v1821
    %v1845 = vunpack.c.l.b16 %v1822
    %v1846 = vunpack.c.l.b16 %v1823
    %v1847 = vunpack.c.l.b16 %v1824
    %v1848 = vunpack.c.l.b16 %v1825
    %v1849 = vunpack.c.l.b16 %v1826
    %v1850 = vunpack.c.l.b16 %v1827
    %v1851 = vunpack.c.l.b16 %v1828
    %v1852 = vpack.c.b16 %v1845, %v1844
    %v1853 = vpack.c.b16 %v1847, %v1846
    %v1854 = vpack.c.b16 %v1849, %v1848
    %v1855 = vpack.c.b16 %v1851, %v1850
    %v1861 = vsel %vm463, %v1820, 0
    %1863 = vmatprep.subr.bf16.mxu0 0
    %1864 = vmatpush1.bf16.msra.mxu0 %v1852
    %1865 = vmatprep.subr.bf16.mxu0 0
    %1866 = vmatpush1.bf16.msra.mxu0 %v1853
    %1867 = vmatprep.subr.bf16.mxu0 0
    %1868 = vmatpush1.bf16.msra.mxu0 %v1854
    %1869 = vmatprep.subr.bf16.mxu0 0
    %1870 = vmatpush1.bf16.msra.mxu0 %v1855
    %1871 = vmatprep.subr.bf16.mxu0 0
    %1872 = vmatpush1.bf16.msra.mxu0 0
    %1873 = vmatprep.subr.bf16.mxu0 0
    %1874 = vmatpush1.bf16.msra.mxu0 0
    %1875 = vmatprep.subr.bf16.mxu0 0
    %1876 = vmatpush1.bf16.msra.mxu0 0
    %1877 = vmatprep.subr.bf16.mxu0 0
    %1878 = vmatpush1.bf16.msra.mxu0 0
    %1879 = vmatprep.subr.bf16.mxu0 0
    %1880 = vmatpush1.bf16.msra.mxu0 0
    %1881 = vmatprep.subr.bf16.mxu0 0
    %1882 = vmatpush1.bf16.msra.mxu0 0
    %1883 = vmatprep.subr.bf16.mxu0 0
    %1884 = vmatpush1.bf16.msra.mxu0 0
    %1885 = vmatprep.subr.bf16.mxu0 0
    %1886 = vmatpush1.bf16.msra.mxu0 0
    %1887 = vmatprep.subr.bf16.mxu0 0
    %1888 = vmatpush1.bf16.msra.mxu0 0
    %1889 = vmatprep.subr.bf16.mxu0 0
    %1890 = vmatpush1.bf16.msra.mxu0 0
    %1891 = vmatprep.subr.bf16.mxu0 0
    %1892 = vmatpush1.bf16.msra.mxu0 0
    %1893 = vmatprep.subr.bf16.mxu0 0
    %1894 = vmatpush1.bf16.msra.mxu0 0
    %1895 = vmatprep.mubr.bf16.mxu0 0
    %1896 = vmatmul.mubr.bf16.gmra.mrb[0].mxu0 %v1861
    %v1897 = vpop.f32.mrb[0].mxu0
    %v1898 = vadd.f32 %v1834, %v1897
    %v1899 = vpop.f32.mrb[0].mxu0
    %v1900 = vpop.f32.mrb[0].mxu0
    %v1901 = vpop.f32.mrb[0].mxu0
    %1902 = vdwg.mxu0
    %vm1903 = vcmask 64512
    %v1904 = vsel %vm1903, %v1898, -inf
    %1905 = vmax.xlane.f32.xlu0 %v1904
    %v1906 = vpop.xlane.xlu0 %1905
    %v1907 = vsub.f32 %v1898, %v1906
    %v1908 = vmul.f32 %v1907, 1.442695
    %v1909 = vpow.pop %v1908
    %v1910 = vsel %vm1903, %v1909, 0.0
    %1911 = vadd.xlane.f32.xlu0 %v1910
    %v1912 = vpop.xlane.xlu0 %1911
    %v1913 = vlog2.pop %v1912
    %v1914 = vmul.f32 %v1913, 0.6931472
    %v1915 = vsub.f32 %v1907, %v1914
    %vm1916 = vcmask 58368
    %1917 = vst.msk [vmem:[#allocation8] sm:$0x3] %vm1916, %v1915
    // Predicated region
    $region42: #{tpu_custom_call.1} parent=1 // pred_check
      _
    $region43: #{tpu_custom_call.1} parent=1 // pred_check_branch
      %1919 = sbr.rel (0) target = $region45
    $region44: #{tpu_custom_call.1} parent=1 // pred_region
      %s1921 = ssub.s32 32, 32
      %1922 = vsyncadd [#allocation5], %s1921
      %s1924 = sshll.u32 [#allocation8], 4
      %s1925 = int_to_ptr.vmem [resolvable:$true] %s1924
      %1927 = dma.vmem_to_hbm [thread:$0]  %s1925, 32, %s8, [#allocation5]
    $region45: #{tpu_custom_call.1} parent=1 // pred_fallthru
      _
    // Predicated region
    $region46: #{tpu_custom_call.1} parent=1 // pred_check
      _
    $region47: #{tpu_custom_call.1} parent=1 // pred_check_branch
      %1929 = sbr.rel (0) target = $region49
    $region48: #{tpu_custom_call.1} parent=1 // pred_region
      %1930 = dma.done [#allocation5], 32
    $region49: #{tpu_custom_call.1} parent=1 // pred_fallthru
      _
    %1931 = vsyncpa [#allocation4], 1
    %1932 = vsyncpa [#allocation7], 1
    %1933 = vsyncpa [#allocation5], 1

</llo_original>
